<compile_context>
chip_gen: v7x
topology: tpu7x:2x2x1
jax: 0.10.0
libtpu: 0.0.40
codegen_flags: <defaults>
</compile_context>

<pallas_src>
import functools

import jax
import jax.numpy as jnp
from jax.experimental import pallas as pl
from jax.experimental.pallas import tpu as pltpu


# ----------------------------------------------------------------------------
# Fused per-layer Pallas kernel
# ----------------------------------------------------------------------------

def _layernorm(x, g, b):
    mu = jnp.mean(x, axis=-1, keepdims=True)
    var = jnp.mean(jnp.square(x - mu), axis=-1, keepdims=True)
    return (x - mu) * jax.lax.rsqrt(var + 1e-5) * g + b


def reformer_layer_kernel(x_ref, g1_ref, b1_ref, wqkv_ref, bqkv_ref, wo_ref, bo_ref,
                          g2_ref, b2_ref, wf1_ref, bf1_ref, wf2_ref, bf2_ref,
                          o_ref, *, num_heads):
    B, S, E = x_ref.shape
    H = num_heads
    Dh = E // H
    scale = 1.0 / (Dh ** 0.5)

    x3 = x_ref[...]                          # (B, S, E)
    x = x3.reshape(B * S, E)                 # rows = B*S, lanes = E

    # ---- attention block (PreNorm + residual), all fused ----
    h = _layernorm(x, g1_ref[...], b1_ref[...])
    qkv = jnp.dot(h, wqkv_ref[...], preferred_element_type=jnp.float32) + bqkv_ref[...]

    # causal mask iotas hoisted out of the head loop (loop-invariant)
    row = jax.lax.broadcasted_iota(jnp.int32, (B, S, S), 1)
    col = jax.lax.broadcasted_iota(jnp.int32, (B, S, S), 2)
    causal = col <= row

    head_outs = []
    for hh in range(H):                      # static unroll over heads
        q = qkv[:, hh * Dh:(hh + 1) * Dh].reshape(B, S, Dh)
        k = qkv[:, E + hh * Dh:E + (hh + 1) * Dh].reshape(B, S, Dh)
        v = qkv[:, 2 * E + hh * Dh:2 * E + (hh + 1) * Dh].reshape(B, S, Dh)

        s = jnp.einsum('bqd,bkd->bqk', q, k,
                       preferred_element_type=jnp.float32) * scale   # (B, S, S)
        s = jnp.where(causal, s, -1e30)
        m = jnp.max(s, axis=-1, keepdims=True)
        p = jnp.exp(s - m)
        l = jnp.sum(p, axis=-1, keepdims=True)
        o = jnp.einsum('bqk,bkd->bqd', p, v,
                       preferred_element_type=jnp.float32)            # (B, S, Dh)
        head_outs.append(o * pl.reciprocal(l, approx=True))

    attn = jnp.concatenate(head_outs, axis=-1).reshape(B * S, E)
    attn = jnp.dot(attn, wo_ref[...], preferred_element_type=jnp.float32) + bo_ref[...]
    y = x + attn                                                       # residual 1 (fused)

    # ---- feed-forward block (PreNorm + residual), all fused ----
    h2 = _layernorm(y, g2_ref[...], b2_ref[...])
    f = jnp.dot(h2, wf1_ref[...], preferred_element_type=jnp.float32) + bf1_ref[...]
    f = jax.nn.gelu(f)
    f = jnp.dot(f, wf2_ref[...], preferred_element_type=jnp.float32) + bf2_ref[...]

    o_ref[...] = (y + f).reshape(B, S, E)                              # residual 2 (fused)


def pallas_reformer_layer(x, layer, *, num_heads):
    B, S, E = x.shape
    Hd = layer["w_ff1"].shape[1]
    vmem = pl.BlockSpec(memory_space=pltpu.MemorySpace.VMEM)
    kernel = functools.partial(reformer_layer_kernel, num_heads=num_heads)
    return pl.pallas_call(
        kernel,
        out_shape=jax.ShapeDtypeStruct((B, S, E), jnp.float32),
        in_specs=[vmem] * 13,
        out_specs=vmem,
    )(
        x,
        layer["ln1_g"].reshape(1, E), layer["ln1_b"].reshape(1, E),
        layer["w_qkv"], layer["b_qkv"].reshape(1, 3 * E),
        layer["w_o"], layer["b_o"].reshape(1, E),
        layer["ln2_g"].reshape(1, E), layer["ln2_b"].reshape(1, E),
        layer["w_ff1"], layer["b_ff1"].reshape(1, Hd),
        layer["w_ff2"], layer["b_ff2"].reshape(1, E),
    )


# ----------------------------------------------------------------------------
# Model: parameter init + forward
# ----------------------------------------------------------------------------

def init_params(key, *, vocab_size, embedding_size, num_heads, num_layers,
                const_vector_length, n_class, ff_mult=4):
    del num_heads
    keys = jax.random.split(key, 4 + num_layers)
    scale = 0.02
    params = {
        "tok_emb": scale * jax.random.normal(
            keys[0], (vocab_size, embedding_size), jnp.float32),
        "pos_emb": scale * jax.random.normal(
            keys[1], (const_vector_length, embedding_size), jnp.float32),
        "final_w": scale * jax.random.normal(
            keys[2], (embedding_size, n_class), jnp.float32),
        "final_b": jnp.zeros((n_class,), jnp.float32),
        "layers": [],
    }
    E = embedding_size
    Hd = ff_mult * E
    for li in range(num_layers):
        lk = jax.random.split(keys[4 + li], 4)
        params["layers"].append({
            "ln1_g": jnp.ones((E,), jnp.float32),
            "ln1_b": jnp.zeros((E,), jnp.float32),
            "w_qkv": scale * jax.random.normal(lk[0], (E, 3 * E), jnp.float32),
            "b_qkv": jnp.zeros((3 * E,), jnp.float32),
            "w_o": scale * jax.random.normal(lk[1], (E, E), jnp.float32),
            "b_o": jnp.zeros((E,), jnp.float32),
            "ln2_g": jnp.ones((E,), jnp.float32),
            "ln2_b": jnp.zeros((E,), jnp.float32),
            "w_ff1": scale * jax.random.normal(lk[2], (E, Hd), jnp.float32),
            "b_ff1": jnp.zeros((Hd,), jnp.float32),
            "w_ff2": scale * jax.random.normal(lk[3], (Hd, E), jnp.float32),
            "b_ff2": jnp.zeros((E,), jnp.float32),
        })
    return params


@functools.partial(jax.jit, static_argnames=("num_heads", "pooling"))
def reformer_forward(tokens, params, *, num_heads, pooling="avg"):
    B, S = tokens.shape

    # --- embeddings (gather glue stays in JAX) ---
    x = params["tok_emb"][tokens]                          # (B, S, E)
    x = x + params["pos_emb"][jnp.arange(S)][None, :, :]

    # --- transformer layers: one fused Pallas kernel per layer ---
    for layer in params["layers"]:
        x = pallas_reformer_layer(x, layer, num_heads=num_heads)

    # --- pooling + classifier (tiny; XLA-fused per perf review) ---
    if pooling == "avg":
        pooled = jnp.mean(x, axis=1)                       # (B, E)
    elif pooling == "cls":
        pooled = x[:, 0, :]
    else:  # 'flatten'
        pooled = x.reshape(B, -1)

    logits = pooled @ params["final_w"] + params["final_b"]
    return logits                                          # (B, n_class)


# ----------------------------------------------------------------------------
# Main
# ----------------------------------------------------------------------------

if __name__ == "__main__":
    vocab_size = 50
    embedding_size = 32
    num_heads = 2
    num_layers = 2
    const_vector_length = 8   # sequence length
    n_class = 4
    batch = 2
    pooling = "avg"

    key = jax.random.PRNGKey(0)
    pkey, tkey = jax.random.split(key)

    params = init_params(
        pkey,
        vocab_size=vocab_size,
        embedding_size=embedding_size,
        num_heads=num_heads,
        num_layers=num_layers,
        const_vector_length=const_vector_length,
        n_class=n_class,
    )

    tokens = jax.random.randint(
        tkey, (batch, const_vector_length), 0, vocab_size, dtype=jnp.int32)

    logits = reformer_forward(tokens, params, num_heads=num_heads, pooling=pooling)
    logits = jax.block_until_ready(logits)

    assert logits.shape == (batch, n_class), logits.shape
    assert jnp.all(jnp.isfinite(logits))
    print("KERNEL_OK")
</pallas_src>

<mosaic_0001>
module attributes {stable_mosaic.version = 11 : i64} {
  func.func @reformer_layer_kernel(%arg0: memref<2x8x32xf32, #tpu.memory_space<vmem>>, %arg1: memref<1x32xf32, #tpu.memory_space<vmem>>, %arg2: memref<1x32xf32, #tpu.memory_space<vmem>>, %arg3: memref<32x96xf32, #tpu.memory_space<vmem>>, %arg4: memref<1x96xf32, #tpu.memory_space<vmem>>, %arg5: memref<32x32xf32, #tpu.memory_space<vmem>>, %arg6: memref<1x32xf32, #tpu.memory_space<vmem>>, %arg7: memref<1x32xf32, #tpu.memory_space<vmem>>, %arg8: memref<1x32xf32, #tpu.memory_space<vmem>>, %arg9: memref<32x128xf32, #tpu.memory_space<vmem>>, %arg10: memref<1x128xf32, #tpu.memory_space<vmem>>, %arg11: memref<128x32xf32, #tpu.memory_space<vmem>>, %arg12: memref<1x32xf32, #tpu.memory_space<vmem>>, %arg13: memref<2x8x32xf32, #tpu.memory_space<vmem>>) attributes {dimension_semantics = [], scalar_prefetch = 0 : i64, scratch_operands = 0 : i64, tpu.core_type = #tpu.core_type<tc>} {
    %c0 = arith.constant 0 : index
    %c0_0 = arith.constant 0 : index
    %c0_1 = arith.constant 0 : index
    %0 = vector.load %arg0[%c0, %c0_0, %c0_1] : memref<2x8x32xf32, #tpu.memory_space<vmem>>, vector<2x8x32xf32>
    %1 = vector.shape_cast %0 : vector<2x8x32xf32> to vector<16x32xf32>
    %c0_2 = arith.constant 0 : index
    %c0_3 = arith.constant 0 : index
    %2 = vector.load %arg1[%c0_2, %c0_3] : memref<1x32xf32, #tpu.memory_space<vmem>>, vector<1x32xf32>
    %c0_4 = arith.constant 0 : index
    %c0_5 = arith.constant 0 : index
    %3 = vector.load %arg2[%c0_4, %c0_5] : memref<1x32xf32, #tpu.memory_space<vmem>>, vector<1x32xf32>
    %cst = arith.constant dense<0.000000e+00> : vector<16xf32>
    %4 = vector.multi_reduction <add>, %1, %cst [1] : vector<16x32xf32> to vector<16xf32>
    %5 = vector.shape_cast %4 : vector<16xf32> to vector<16x1xf32>
    %cst_6 = arith.constant 3.200000e+01 : f32
    %6 = vector.broadcast %cst_6 : f32 to vector<16x1xf32>
    %7 = arith.divf %5, %6 : vector<16x1xf32>
    %8 = vector.broadcast %7 : vector<16x1xf32> to vector<16x32xf32>
    %9 = arith.subf %1, %8 : vector<16x32xf32>
    %10 = arith.mulf %9, %9 : vector<16x32xf32>
    %cst_7 = arith.constant dense<0.000000e+00> : vector<16xf32>
    %11 = vector.multi_reduction <add>, %10, %cst_7 [1] : vector<16x32xf32> to vector<16xf32>
    %12 = vector.shape_cast %11 : vector<16xf32> to vector<16x1xf32>
    %cst_8 = arith.constant 3.200000e+01 : f32
    %13 = vector.broadcast %cst_8 : f32 to vector<16x1xf32>
    %14 = arith.divf %12, %13 : vector<16x1xf32>
    %15 = vector.broadcast %7 : vector<16x1xf32> to vector<16x32xf32>
    %16 = arith.subf %1, %15 : vector<16x32xf32>
    %cst_9 = arith.constant 9.99999974E-6 : f32
    %17 = vector.broadcast %cst_9 : f32 to vector<16x1xf32>
    %18 = arith.addf %14, %17 : vector<16x1xf32>
    %19 = math.rsqrt %18 : vector<16x1xf32>
    %20 = vector.broadcast %19 : vector<16x1xf32> to vector<16x32xf32>
    %21 = arith.mulf %16, %20 : vector<16x32xf32>
    %22 = vector.broadcast %2 : vector<1x32xf32> to vector<16x32xf32>
    %23 = arith.mulf %21, %22 : vector<16x32xf32>
    %24 = vector.broadcast %3 : vector<1x32xf32> to vector<16x32xf32>
    %25 = arith.addf %23, %24 : vector<16x32xf32>
    %c0_10 = arith.constant 0 : index
    %c0_11 = arith.constant 0 : index
    %26 = vector.load %arg3[%c0_10, %c0_11] : memref<32x96xf32, #tpu.memory_space<vmem>>, vector<32x96xf32>
    %cst_12 = arith.constant dense<0.000000e+00> : vector<16x96xf32>
    %27 = tpu.matmul %25, %26, %cst_12 {dimension_numbers = #tpu.dot_dimension_numbers<[1], [0], [0], [1], [0, 0, 1, 1], [], []>} : vector<16x32xf32>, vector<32x96xf32>, vector<16x96xf32> -> vector<16x96xf32>
    %c0_13 = arith.constant 0 : index
    %c0_14 = arith.constant 0 : index
    %28 = vector.load %arg4[%c0_13, %c0_14] : memref<1x96xf32, #tpu.memory_space<vmem>>, vector<1x96xf32>
    %29 = vector.broadcast %28 : vector<1x96xf32> to vector<16x96xf32>
    %30 = arith.addf %27, %29 : vector<16x96xf32>
    %31 = tpu.iota {dimensions = array<i32: 1>} : vector<2x8x8xi32>
    %32 = tpu.iota {dimensions = array<i32: 2>} : vector<2x8x8xi32>
    %33 = arith.cmpi sle, %32, %31 : vector<2x8x8xi32>
    %34 = vector.extract_strided_slice %30 {offsets = [0, 0], sizes = [16, 16], strides = [1, 1]} : vector<16x96xf32> to vector<16x16xf32>
    %35 = vector.shape_cast %34 : vector<16x16xf32> to vector<2x8x16xf32>
    %36 = vector.extract_strided_slice %30 {offsets = [0, 32], sizes = [16, 16], strides = [1, 1]} : vector<16x96xf32> to vector<16x16xf32>
    %37 = vector.shape_cast %36 : vector<16x16xf32> to vector<2x8x16xf32>
    %38 = vector.extract_strided_slice %30 {offsets = [0, 64], sizes = [16, 16], strides = [1, 1]} : vector<16x96xf32> to vector<16x16xf32>
    %39 = vector.shape_cast %38 : vector<16x16xf32> to vector<2x8x16xf32>
    "tpu.trace_start"() <{level = 10 : i32, message = "bqd,bkd->bqk"}> : () -> ()
    %cst_15 = arith.constant dense<0.000000e+00> : vector<2x8x8xf32>
    %40 = tpu.matmul %35, %37, %cst_15 {dimension_numbers = #tpu.dot_dimension_numbers<[2], [2], [1], [1], [0, 0, 0, 1, 1, 1], [0], [0]>} : vector<2x8x16xf32>, vector<2x8x16xf32>, vector<2x8x8xf32> -> vector<2x8x8xf32>
    "tpu.trace_stop"() : () -> ()
    %cst_16 = arith.constant 2.500000e-01 : f32
    %41 = vector.broadcast %cst_16 : f32 to vector<2x8x8xf32>
    %42 = arith.mulf %40, %41 : vector<2x8x8xf32>
    %cst_17 = arith.constant -1.000000e+30 : f32
    %43 = vector.broadcast %cst_17 : f32 to vector<2x8x8xf32>
    %44 = arith.select %33, %42, %43 : vector<2x8x8xi1>, vector<2x8x8xf32>
    %cst_18 = arith.constant dense<0xFF800000> : vector<2x8xf32>
    %45 = vector.multi_reduction <maximumf>, %44, %cst_18 [2] : vector<2x8x8xf32> to vector<2x8xf32>
    %46 = vector.shape_cast %45 : vector<2x8xf32> to vector<2x8x1xf32>
    %47 = vector.broadcast %46 : vector<2x8x1xf32> to vector<2x8x8xf32>
    %48 = arith.subf %44, %47 : vector<2x8x8xf32>
    %49 = math.exp %48 : vector<2x8x8xf32>
    %cst_19 = arith.constant dense<0.000000e+00> : vector<2x8xf32>
    %50 = vector.multi_reduction <add>, %49, %cst_19 [2] : vector<2x8x8xf32> to vector<2x8xf32>
    %51 = vector.shape_cast %50 : vector<2x8xf32> to vector<2x8x1xf32>
    "tpu.trace_start"() <{level = 10 : i32, message = "bqk,bkd->bqd"}> : () -> ()
    %cst_20 = arith.constant dense<0.000000e+00> : vector<2x8x16xf32>
    %52 = tpu.matmul %49, %39, %cst_20 {dimension_numbers = #tpu.dot_dimension_numbers<[2], [1], [1], [2], [0, 0, 0, 1, 1, 2], [0], [0]>} : vector<2x8x8xf32>, vector<2x8x16xf32>, vector<2x8x16xf32> -> vector<2x8x16xf32>
    "tpu.trace_stop"() : () -> ()
    %53 = tpu.reciprocal %51 {approx = true} : vector<2x8x1xf32> -> vector<2x8x1xf32>
    %54 = vector.broadcast %53 : vector<2x8x1xf32> to vector<2x8x16xf32>
    %55 = arith.mulf %52, %54 : vector<2x8x16xf32>
    %56 = vector.extract_strided_slice %30 {offsets = [0, 16], sizes = [16, 16], strides = [1, 1]} : vector<16x96xf32> to vector<16x16xf32>
    %57 = vector.shape_cast %56 : vector<16x16xf32> to vector<2x8x16xf32>
    %58 = vector.extract_strided_slice %30 {offsets = [0, 48], sizes = [16, 16], strides = [1, 1]} : vector<16x96xf32> to vector<16x16xf32>
    %59 = vector.shape_cast %58 : vector<16x16xf32> to vector<2x8x16xf32>
    %60 = vector.extract_strided_slice %30 {offsets = [0, 80], sizes = [16, 16], strides = [1, 1]} : vector<16x96xf32> to vector<16x16xf32>
    %61 = vector.shape_cast %60 : vector<16x16xf32> to vector<2x8x16xf32>
    "tpu.trace_start"() <{level = 10 : i32, message = "bqd,bkd->bqk"}> : () -> ()
    %cst_21 = arith.constant dense<0.000000e+00> : vector<2x8x8xf32>
    %62 = tpu.matmul %57, %59, %cst_21 {dimension_numbers = #tpu.dot_dimension_numbers<[2], [2], [1], [1], [0, 0, 0, 1, 1, 1], [0], [0]>} : vector<2x8x16xf32>, vector<2x8x16xf32>, vector<2x8x8xf32> -> vector<2x8x8xf32>
    "tpu.trace_stop"() : () -> ()
    %cst_22 = arith.constant 2.500000e-01 : f32
    %63 = vector.broadcast %cst_22 : f32 to vector<2x8x8xf32>
    %64 = arith.mulf %62, %63 : vector<2x8x8xf32>
    %cst_23 = arith.constant -1.000000e+30 : f32
    %65 = vector.broadcast %cst_23 : f32 to vector<2x8x8xf32>
    %66 = arith.select %33, %64, %65 : vector<2x8x8xi1>, vector<2x8x8xf32>
    %cst_24 = arith.constant dense<0xFF800000> : vector<2x8xf32>
    %67 = vector.multi_reduction <maximumf>, %66, %cst_24 [2] : vector<2x8x8xf32> to vector<2x8xf32>
    %68 = vector.shape_cast %67 : vector<2x8xf32> to vector<2x8x1xf32>
    %69 = vector.broadcast %68 : vector<2x8x1xf32> to vector<2x8x8xf32>
    %70 = arith.subf %66, %69 : vector<2x8x8xf32>
    %71 = math.exp %70 : vector<2x8x8xf32>
    %cst_25 = arith.constant dense<0.000000e+00> : vector<2x8xf32>
    %72 = vector.multi_reduction <add>, %71, %cst_25 [2] : vector<2x8x8xf32> to vector<2x8xf32>
    %73 = vector.shape_cast %72 : vector<2x8xf32> to vector<2x8x1xf32>
    "tpu.trace_start"() <{level = 10 : i32, message = "bqk,bkd->bqd"}> : () -> ()
    %cst_26 = arith.constant dense<0.000000e+00> : vector<2x8x16xf32>
    %74 = tpu.matmul %71, %61, %cst_26 {dimension_numbers = #tpu.dot_dimension_numbers<[2], [1], [1], [2], [0, 0, 0, 1, 1, 2], [0], [0]>} : vector<2x8x8xf32>, vector<2x8x16xf32>, vector<2x8x16xf32> -> vector<2x8x16xf32>
    "tpu.trace_stop"() : () -> ()
    %75 = tpu.reciprocal %73 {approx = true} : vector<2x8x1xf32> -> vector<2x8x1xf32>
    %76 = vector.broadcast %75 : vector<2x8x1xf32> to vector<2x8x16xf32>
    %77 = arith.mulf %74, %76 : vector<2x8x16xf32>
    %78 = tpu.concatenate %55, %77 in 2 : vector<2x8x16xf32>, vector<2x8x16xf32> -> vector<2x8x32xf32>
    %79 = vector.shape_cast %78 : vector<2x8x32xf32> to vector<16x32xf32>
    %c0_27 = arith.constant 0 : index
    %c0_28 = arith.constant 0 : index
    %80 = vector.load %arg5[%c0_27, %c0_28] : memref<32x32xf32, #tpu.memory_space<vmem>>, vector<32x32xf32>
    %cst_29 = arith.constant dense<0.000000e+00> : vector<16x32xf32>
    %81 = tpu.matmul %79, %80, %cst_29 {dimension_numbers = #tpu.dot_dimension_numbers<[1], [0], [0], [1], [0, 0, 1, 1], [], []>} : vector<16x32xf32>, vector<32x32xf32>, vector<16x32xf32> -> vector<16x32xf32>
    %c0_30 = arith.constant 0 : index
    %c0_31 = arith.constant 0 : index
    %82 = vector.load %arg6[%c0_30, %c0_31] : memref<1x32xf32, #tpu.memory_space<vmem>>, vector<1x32xf32>
    %83 = vector.broadcast %82 : vector<1x32xf32> to vector<16x32xf32>
    %84 = arith.addf %81, %83 : vector<16x32xf32>
    %85 = arith.addf %1, %84 : vector<16x32xf32>
    %c0_32 = arith.constant 0 : index
    %c0_33 = arith.constant 0 : index
    %86 = vector.load %arg7[%c0_32, %c0_33] : memref<1x32xf32, #tpu.memory_space<vmem>>, vector<1x32xf32>
    %c0_34 = arith.constant 0 : index
    %c0_35 = arith.constant 0 : index
    %87 = vector.load %arg8[%c0_34, %c0_35] : memref<1x32xf32, #tpu.memory_space<vmem>>, vector<1x32xf32>
    %cst_36 = arith.constant dense<0.000000e+00> : vector<16xf32>
    %88 = vector.multi_reduction <add>, %85, %cst_36 [1] : vector<16x32xf32> to vector<16xf32>
    %89 = vector.shape_cast %88 : vector<16xf32> to vector<16x1xf32>
    %cst_37 = arith.constant 3.200000e+01 : f32
    %90 = vector.broadcast %cst_37 : f32 to vector<16x1xf32>
    %91 = arith.divf %89, %90 : vector<16x1xf32>
    %92 = vector.broadcast %91 : vector<16x1xf32> to vector<16x32xf32>
    %93 = arith.subf %85, %92 : vector<16x32xf32>
    %94 = arith.mulf %93, %93 : vector<16x32xf32>
    %cst_38 = arith.constant dense<0.000000e+00> : vector<16xf32>
    %95 = vector.multi_reduction <add>, %94, %cst_38 [1] : vector<16x32xf32> to vector<16xf32>
    %96 = vector.shape_cast %95 : vector<16xf32> to vector<16x1xf32>
    %cst_39 = arith.constant 3.200000e+01 : f32
    %97 = vector.broadcast %cst_39 : f32 to vector<16x1xf32>
    %98 = arith.divf %96, %97 : vector<16x1xf32>
    %99 = vector.broadcast %91 : vector<16x1xf32> to vector<16x32xf32>
    %100 = arith.subf %85, %99 : vector<16x32xf32>
    %cst_40 = arith.constant 9.99999974E-6 : f32
    %101 = vector.broadcast %cst_40 : f32 to vector<16x1xf32>
    %102 = arith.addf %98, %101 : vector<16x1xf32>
    %103 = math.rsqrt %102 : vector<16x1xf32>
    %104 = vector.broadcast %103 : vector<16x1xf32> to vector<16x32xf32>
    %105 = arith.mulf %100, %104 : vector<16x32xf32>
    %106 = vector.broadcast %86 : vector<1x32xf32> to vector<16x32xf32>
    %107 = arith.mulf %105, %106 : vector<16x32xf32>
    %108 = vector.broadcast %87 : vector<1x32xf32> to vector<16x32xf32>
    %109 = arith.addf %107, %108 : vector<16x32xf32>
    %c0_41 = arith.constant 0 : index
    %c0_42 = arith.constant 0 : index
    %110 = vector.load %arg9[%c0_41, %c0_42] : memref<32x128xf32, #tpu.memory_space<vmem>>, vector<32x128xf32>
    %cst_43 = arith.constant dense<0.000000e+00> : vector<16x128xf32>
    %111 = tpu.matmul %109, %110, %cst_43 {dimension_numbers = #tpu.dot_dimension_numbers<[1], [0], [0], [1], [0, 0, 1, 1], [], []>} : vector<16x32xf32>, vector<32x128xf32>, vector<16x128xf32> -> vector<16x128xf32>
    %c0_44 = arith.constant 0 : index
    %c0_45 = arith.constant 0 : index
    %112 = vector.load %arg10[%c0_44, %c0_45] : memref<1x128xf32, #tpu.memory_space<vmem>>, vector<1x128xf32>
    %113 = vector.broadcast %112 : vector<1x128xf32> to vector<16x128xf32>
    %114 = arith.addf %111, %113 : vector<16x128xf32>
    %115 = arith.mulf %114, %114 : vector<16x128xf32>
    %116 = arith.mulf %114, %115 : vector<16x128xf32>
    %cst_46 = arith.constant 4.471500e-02 : f32
    %117 = vector.broadcast %cst_46 : f32 to vector<16x128xf32>
    %118 = arith.mulf %117, %116 : vector<16x128xf32>
    %119 = arith.addf %114, %118 : vector<16x128xf32>
    %cst_47 = arith.constant 0.797884583 : f32
    %120 = vector.broadcast %cst_47 : f32 to vector<16x128xf32>
    %121 = arith.mulf %120, %119 : vector<16x128xf32>
    %122 = math.tanh %121 : vector<16x128xf32>
    %cst_48 = arith.constant 1.000000e+00 : f32
    %123 = vector.broadcast %cst_48 : f32 to vector<16x128xf32>
    %124 = arith.addf %123, %122 : vector<16x128xf32>
    %cst_49 = arith.constant 5.000000e-01 : f32
    %125 = vector.broadcast %cst_49 : f32 to vector<16x128xf32>
    %126 = arith.mulf %125, %124 : vector<16x128xf32>
    %127 = arith.mulf %114, %126 : vector<16x128xf32>
    %c0_50 = arith.constant 0 : index
    %c0_51 = arith.constant 0 : index
    %128 = vector.load %arg11[%c0_50, %c0_51] : memref<128x32xf32, #tpu.memory_space<vmem>>, vector<128x32xf32>
    %cst_52 = arith.constant dense<0.000000e+00> : vector<16x32xf32>
    %129 = tpu.matmul %127, %128, %cst_52 {dimension_numbers = #tpu.dot_dimension_numbers<[1], [0], [0], [1], [0, 0, 1, 1], [], []>} : vector<16x128xf32>, vector<128x32xf32>, vector<16x32xf32> -> vector<16x32xf32>
    %c0_53 = arith.constant 0 : index
    %c0_54 = arith.constant 0 : index
    %130 = vector.load %arg12[%c0_53, %c0_54] : memref<1x32xf32, #tpu.memory_space<vmem>>, vector<1x32xf32>
    %131 = vector.broadcast %130 : vector<1x32xf32> to vector<16x32xf32>
    %132 = arith.addf %129, %131 : vector<16x32xf32>
    %133 = arith.addf %85, %132 : vector<16x32xf32>
    %134 = vector.shape_cast %133 : vector<16x32xf32> to vector<2x8x32xf32>
    %c0_55 = arith.constant 0 : index
    %c0_56 = arith.constant 0 : index
    %c0_57 = arith.constant 0 : index
    %135 = vector.load %arg13[%c0_55, %c0_56, %c0_57] : memref<2x8x32xf32, #tpu.memory_space<vmem>>, vector<2x8x32xf32>
    tpu.vector_store %arg13[%c0_55, %c0_56, %c0_57], %134 {strides = array<i32>} : memref<2x8x32xf32, #tpu.memory_space<vmem>>, vector<2x8x32xf32>,
    return
  }
}

</mosaic_0001>

<llo_original>
// kernel: reformer_forward.2
$region0: #{reformer_forward.2}
  #allocation0 [shape = 'u32[]', space=smem, size = 0x4, offset = 0x4, fixed_abs, tag = 'smem constant byte address 0x4 - core index']
  #allocation1 [shape = 'u32[144,128]{1,0:T(1,128)}', space=vmem, size = 0x12000, scoped, tag = 'internal scratch']
  %s0 = inlined_call_operand.vmem [shape: f32[2,8,32], index: 0, kind: input, shape index: {}]
  %s1 = inlined_call_operand.vmem [shape: f32[1,32], index: 1, kind: input, shape index: {}]
  %s2 = inlined_call_operand.vmem [shape: f32[1,32], index: 2, kind: input, shape index: {}]
  %s3 = inlined_call_operand.vmem [shape: f32[32,96], index: 3, kind: input, shape index: {}]
  %s4 = inlined_call_operand.vmem [shape: f32[1,96], index: 4, kind: input, shape index: {}]
  %s5 = inlined_call_operand.vmem [shape: f32[32,32], index: 5, kind: input, shape index: {}]
  %s6 = inlined_call_operand.vmem [shape: f32[1,32], index: 6, kind: input, shape index: {}]
  %s7 = inlined_call_operand.vmem [shape: f32[1,32], index: 7, kind: input, shape index: {}]
  %s8 = inlined_call_operand.vmem [shape: f32[1,32], index: 8, kind: input, shape index: {}]
  %s9 = inlined_call_operand.vmem [shape: f32[32,128], index: 9, kind: input, shape index: {}]
  %s10 = inlined_call_operand.vmem [shape: f32[1,128], index: 10, kind: input, shape index: {}]
  %s11 = inlined_call_operand.vmem [shape: f32[128,32], index: 11, kind: input, shape index: {}]
  %s12 = inlined_call_operand.vmem [shape: f32[1,32], index: 12, kind: input, shape index: {}]
  %s13 = inlined_call_operand.vmem [shape: f32[2,8,32], index: 13, kind: output, shape index: {}]
  %s14 = sld [smem:[#allocation0]]
  $region62: #{reformer_forward.2} parent=0
    _
  %s16 = ssub.s32 1, %s14
  %s17 = scalar_select 0, %s16, %s14
  // Predicated region
  $region2: #{reformer_forward.2} parent=0 // pred_check
    _
  $region3: #{reformer_forward.2} parent=0 // pred_check_branch
    %19 = sbr.rel (0) target = $region5
  $region4: #{reformer_forward.2} parent=0 // pred_region
    _
  $region5: #{reformer_forward.2} parent=0 // pred_fallthru
    _
  // Predicated region
  $region6: #{reformer_forward.2} parent=0 // pred_check
    _
  $region7: #{reformer_forward.2} parent=0 // pred_check_branch
    %21 = sbr.rel (0) target = $region9
  $region8: #{reformer_forward.2} parent=0 // pred_region
    _
  $region9: #{reformer_forward.2} parent=0 // pred_fallthru
    _
  // Predicated region
  $region10: #{reformer_forward.2} parent=0 // pred_check
    _
  $region11: #{reformer_forward.2} parent=0 // pred_check_branch
    %23 = sbr.rel (0) target = $region13
  $region12: #{reformer_forward.2} parent=0 // pred_region
    _
  $region13: #{reformer_forward.2} parent=0 // pred_fallthru
    _
  // Predicated region
  $region14: #{reformer_forward.2} parent=0 // pred_check
    _
  $region15: #{reformer_forward.2} parent=0 // pred_check_branch
    %25 = sbr.rel (0) target = $region17
  $region16: #{reformer_forward.2} parent=0 // pred_region
    _
  $region17: #{reformer_forward.2} parent=0 // pred_fallthru
    _
  // Predicated region
  $region18: #{reformer_forward.2} parent=0 // pred_check
    _
  $region19: #{reformer_forward.2} parent=0 // pred_check_branch
    %27 = sbr.rel (0) target = $region21
  $region20: #{reformer_forward.2} parent=0 // pred_region
    _
  $region21: #{reformer_forward.2} parent=0 // pred_fallthru
    _
  // Predicated region
  $region22: #{reformer_forward.2} parent=0 // pred_check
    _
  $region23: #{reformer_forward.2} parent=0 // pred_check_branch
    %29 = sbr.rel (0) target = $region25
  $region24: #{reformer_forward.2} parent=0 // pred_region
    _
  $region25: #{reformer_forward.2} parent=0 // pred_fallthru
    _
  // Predicated region
  $region26: #{reformer_forward.2} parent=0 // pred_check
    _
  $region27: #{reformer_forward.2} parent=0 // pred_check_branch
    %31 = sbr.rel (0) target = $region29
  $region28: #{reformer_forward.2} parent=0 // pred_region
    _
  $region29: #{reformer_forward.2} parent=0 // pred_fallthru
    _
  // Predicated region
  $region30: #{reformer_forward.2} parent=0 // pred_check
    _
  $region31: #{reformer_forward.2} parent=0 // pred_check_branch
    %33 = sbr.rel (0) target = $region33
  $region32: #{reformer_forward.2} parent=0 // pred_region
    _
  $region33: #{reformer_forward.2} parent=0 // pred_fallthru
    _
  // Predicated region
  $region34: #{reformer_forward.2} parent=0 // pred_check
    _
  $region35: #{reformer_forward.2} parent=0 // pred_check_branch
    %35 = sbr.rel (0) target = $region37
  $region36: #{reformer_forward.2} parent=0 // pred_region
    _
  $region37: #{reformer_forward.2} parent=0 // pred_fallthru
    _
  // Predicated region
  $region38: #{reformer_forward.2} parent=0 // pred_check
    _
  $region39: #{reformer_forward.2} parent=0 // pred_check_branch
    %37 = sbr.rel (0) target = $region41
  $region40: #{reformer_forward.2} parent=0 // pred_region
    _
  $region41: #{reformer_forward.2} parent=0 // pred_fallthru
    _
  // Predicated region
  $region42: #{reformer_forward.2} parent=0 // pred_check
    _
  $region43: #{reformer_forward.2} parent=0 // pred_check_branch
    %39 = sbr.rel (0) target = $region45
  $region44: #{reformer_forward.2} parent=0 // pred_region
    _
  $region45: #{reformer_forward.2} parent=0 // pred_fallthru
    _
  // Predicated region
  $region46: #{reformer_forward.2} parent=0 // pred_check
    _
  $region47: #{reformer_forward.2} parent=0 // pred_check_branch
    %41 = sbr.rel (0) target = $region49
  $region48: #{reformer_forward.2} parent=0 // pred_region
    _
  $region49: #{reformer_forward.2} parent=0 // pred_fallthru
    _
  // Predicated region
  $region50: #{reformer_forward.2} parent=0 // pred_check
    _
  $region51: #{reformer_forward.2} parent=0 // pred_check_branch
    %43 = sbr.rel (0) target = $region53
  $region52: #{reformer_forward.2} parent=0 // pred_region
    _
  $region53: #{reformer_forward.2} parent=0 // pred_fallthru
    _
  %v44 = vld [vmem:[%s0] sm:$0xff]
  %v45 = vld [vmem:[%s0 + $0x8] sm:$0xff]
  %v46 = vld [vmem:[%s1] sm:$0x1]
  %v47 = vld [vmem:[%s2] sm:$0x1]
  %vm48 = vcmask 261120
  %v49 = vsel %vm48, %v44, 0.0
  %50 = vadd.xlane.f32.xlu0 %v49
  %v51 = vpop.xlane.xlu0 %50
  %v52 = vsel %vm48, %v45, 0.0
  %53 = vadd.xlane.f32.xlu0 %v52
  %v54 = vpop.xlane.xlu0 %53
  %v55 = vrcp.pop 32.0
  %v56 = vmul.f32 %v51, %v55
  %v57 = vmul.f32 %v54, %v55
  %v58 = vsub.f32 %v44, %v56
  %v59 = vsub.f32 %v45, %v57
  %v60 = vmul.f32 %v58, %v58
  %v61 = vmul.f32 %v59, %v59
  %v62 = vsel %vm48, %v60, 0.0
  %63 = vadd.xlane.f32.xlu0 %v62
  %v64 = vpop.xlane.xlu0 %63
  %v65 = vsel %vm48, %v61, 0.0
  %66 = vadd.xlane.f32.xlu0 %v65
  %v67 = vpop.xlane.xlu0 %66
  %v68 = vmul.f32 %v64, %v55
  %v69 = vmul.f32 %v67, %v55
  %v70 = vadd.f32 %v68, 1e-05
  %v71 = vadd.f32 %v69, 1e-05
  %v72 = vrsqrt.pop %v70
  %v73 = vrsqrt.pop %v71
  %v74 = vmul.f32 %v58, %v72
  %v75 = vmul.f32 %v59, %v73
  %v77 = vlaneseq
  %v78 = vshrl.u32 %v77, 7
  %v79 = vsub.s32 0, %v78
  %v80 = vrot.slane %v46, %v79
  %v82 = vmul.f32 %v74, %v80
  %v83 = vmul.f32 %v75, %v80
  %v85 = vlaneseq
  %v86 = vshrl.u32 %v85, 7
  %v87 = vsub.s32 0, %v86
  %v88 = vrot.slane %v47, %v87
  %v90 = vadd.f32 %v82, %v88
  %v91 = vadd.f32 %v83, %v88
  %v92 = vld [vmem:[%s3] sm:$0xff]
  %v93 = vld [vmem:[%s3 + $0x8] sm:$0xff]
  %v94 = vld [vmem:[%s3 + $0x10] sm:$0xff]
  %v95 = vld [vmem:[%s3 + $0x18] sm:$0xff]
  %v96 = vld [vmem:[%s4] sm:$0x1]
  %v98 = vlaneseq
  %v99 = vshrl.u32 %v98, 7
  %v100 = vsub.s32 0, %v99
  %v101 = vrot.slane %v96, %v100
  %v104 = vsel %vm48, %v90, 0
  %v107 = vsel %vm48, %v91, 0
  %109 = vmatprep.subr.mxu0 0.0
  %110 = vmatpush1.msra.mxu0 %v92
  %111 = vmatprep.subr.mxu0 0.0
  %112 = vmatpush1.msra.mxu0 %v93
  %113 = vmatprep.subr.mxu0 0.0
  %114 = vmatpush1.msra.mxu0 %v94
  %115 = vmatprep.subr.mxu0 0.0
  %116 = vmatpush1.msra.mxu0 %v95
  %117 = vmatprep.subr.mxu0 0.0
  %118 = vmatpush1.msra.mxu0 0.0
  %119 = vmatprep.subr.mxu0 0.0
  %120 = vmatpush1.msra.mxu0 0.0
  %121 = vmatprep.subr.mxu0 0.0
  %122 = vmatpush1.msra.mxu0 0.0
  %123 = vmatprep.subr.mxu0 0.0
  %124 = vmatpush1.msra.mxu0 0.0
  %125 = vmatprep.subr.mxu0 0.0
  %126 = vmatpush1.msra.mxu0 0.0
  %127 = vmatprep.subr.mxu0 0.0
  %128 = vmatpush1.msra.mxu0 0.0
  %129 = vmatprep.subr.mxu0 0.0
  %130 = vmatpush1.msra.mxu0 0.0
  %131 = vmatprep.subr.mxu0 0.0
  %132 = vmatpush1.msra.mxu0 0.0
  %133 = vmatprep.subr.mxu0 0.0
  %134 = vmatpush1.msra.mxu0 0.0
  %135 = vmatprep.subr.mxu0 0.0
  %136 = vmatpush1.msra.mxu0 0.0
  %137 = vmatprep.subr.mxu0 0.0
  %138 = vmatpush1.msra.mxu0 0.0
  %139 = vmatprep.subr.mxu0 0.0
  %140 = vmatpush1.msra.mxu0 0.0
  %141 = vmatprep.subr.mxu0 0.0
  %142 = vmatpush1.msra.mxu0 0.0
  %143 = vmatprep.subr.mxu0 0.0
  %144 = vmatpush1.msra.mxu0 0.0
  %145 = vmatprep.subr.mxu0 0.0
  %146 = vmatpush1.msra.mxu0 0.0
  %147 = vmatprep.subr.mxu0 0.0
  %148 = vmatpush1.msra.mxu0 0.0
  %149 = vmatprep.subr.mxu0 0.0
  %150 = vmatpush1.msra.mxu0 0.0
  %151 = vmatprep.subr.mxu0 0.0
  %152 = vmatpush1.msra.mxu0 0.0
  %153 = vmatprep.subr.mxu0 0.0
  %154 = vmatpush1.msra.mxu0 0.0
  %155 = vmatprep.subr.mxu0 0.0
  %156 = vmatpush1.msra.mxu0 0.0
  %157 = vmatprep.subr.mxu0 0.0
  %158 = vmatpush1.msra.mxu0 0.0
  %159 = vmatprep.subr.mxu0 0.0
  %160 = vmatpush1.msra.mxu0 0.0
  %161 = vmatprep.subr.mxu0 0.0
  %162 = vmatpush1.msra.mxu0 0.0
  %163 = vmatprep.subr.mxu0 0.0
  %164 = vmatpush1.msra.mxu0 0.0
  %165 = vmatprep.subr.mxu0 0.0
  %166 = vmatpush1.msra.mxu0 0.0
  %167 = vmatprep.subr.mxu0 0.0
  %168 = vmatpush1.msra.mxu0 0.0
  %169 = vmatprep.subr.mxu0 0.0
  %170 = vmatpush1.msra.mxu0 0.0
  %171 = vmatprep.subr.mxu0 0.0
  %172 = vmatpush1.msra.mxu0 0.0
  %173 = vmatprep.mubr.f32.mxu0 0.0
  %174 = vmatmul.mubr.f32.gmra.mrb[0].mxu0 %v104
  %v175 = vpop.f32.mrb[0].mxu0
  %v176 = vadd.f32 %v101, %v175
  %v177 = vpop.f32.mrb[0].mxu0
  %178 = vmatprep.mubr.f32.mxu0 0.0
  %179 = vmatmul.mubr.f32.gmra.mrb[0].mxu0 %v107
  %v180 = vpop.f32.mrb[0].mxu0
  %v181 = vadd.f32 %v101, %v180
  %v182 = vpop.f32.mrb[0].mxu0
  %183 = vdwg.mxu0
  %v184 = vlaneseq
  %v185 = vshrl.u32 %v184, 7
  %v186 = vlaneseq
  %v187 = vand.u32 %v186, 127
  %vm188 = vcmp.le.s32.totalorder %v187, %v185
  %190 = vrot.lane.b32.xlu0 %v176, 96
  %v191 = vpop.permute.xlu0 %190
  %vm192 = vcmask 130048
  %v193 = vsel %vm192, %v176, 0
  %v195 = vsel %vm192, %v191, 0
  %197 = vmatprep.subr.mxu0 0.0
  %198 = vmatpush1.xpose.msra.mxu0 %v195
  %199 = vmatprep.subr.mxu0 0.0
  %200 = vmatpush1.xpose.msra.mxu0 0.0
  %201 = vmatprep.subr.mxu0 0.0
  %202 = vmatpush1.xpose.msra.mxu0 0.0
  %203 = vmatprep.subr.mxu0 0.0
  %204 = vmatpush1.xpose.msra.mxu0 0.0
  %205 = vmatprep.subr.mxu0 0.0
  %206 = vmatpush1.xpose.msra.mxu0 0.0
  %207 = vmatprep.subr.mxu0 0.0
  %208 = vmatpush1.xpose.msra.mxu0 0.0
  %209 = vmatprep.subr.mxu0 0.0
  %210 = vmatpush1.xpose.msra.mxu0 0.0
  %211 = vmatprep.subr.mxu0 0.0
  %212 = vmatpush1.xpose.msra.mxu0 0.0
  %213 = vmatprep.subr.mxu0 0.0
  %214 = vmatpush1.xpose.msra.mxu0 0.0
  %215 = vmatprep.subr.mxu0 0.0
  %216 = vmatpush1.xpose.msra.mxu0 0.0
  %217 = vmatprep.subr.mxu0 0.0
  %218 = vmatpush1.xpose.msra.mxu0 0.0
  %219 = vmatprep.subr.mxu0 0.0
  %220 = vmatpush1.xpose.msra.mxu0 0.0
  %221 = vmatprep.subr.mxu0 0.0
  %222 = vmatpush1.xpose.msra.mxu0 0.0
  %223 = vmatprep.subr.mxu0 0.0
  %224 = vmatpush1.xpose.msra.mxu0 0.0
  %225 = vmatprep.subr.mxu0 0.0
  %226 = vmatpush1.xpose.msra.mxu0 0.0
  %227 = vmatprep.subr.mxu0 0.0
  %228 = vmatpush1.xpose.msra.mxu0 0.0
  %229 = vmatprep.subr.mxu0 0.0
  %230 = vmatpush1.xpose.msra.mxu0 0.0
  %231 = vmatprep.subr.mxu0 0.0
  %232 = vmatpush1.xpose.msra.mxu0 0.0
  %233 = vmatprep.subr.mxu0 0.0
  %234 = vmatpush1.xpose.msra.mxu0 0.0
  %235 = vmatprep.subr.mxu0 0.0
  %236 = vmatpush1.xpose.msra.mxu0 0.0
  %237 = vmatprep.subr.mxu0 0.0
  %238 = vmatpush1.xpose.msra.mxu0 0.0
  %239 = vmatprep.subr.mxu0 0.0
  %240 = vmatpush1.xpose.msra.mxu0 0.0
  %241 = vmatprep.subr.mxu0 0.0
  %242 = vmatpush1.xpose.msra.mxu0 0.0
  %243 = vmatprep.subr.mxu0 0.0
  %244 = vmatpush1.xpose.msra.mxu0 0.0
  %245 = vmatprep.subr.mxu0 0.0
  %246 = vmatpush1.xpose.msra.mxu0 0.0
  %247 = vmatprep.subr.mxu0 0.0
  %248 = vmatpush1.xpose.msra.mxu0 0.0
  %249 = vmatprep.subr.mxu0 0.0
  %250 = vmatpush1.xpose.msra.mxu0 0.0
  %251 = vmatprep.subr.mxu0 0.0
  %252 = vmatpush1.xpose.msra.mxu0 0.0
  %253 = vmatprep.subr.mxu0 0.0
  %254 = vmatpush1.xpose.msra.mxu0 0.0
  %255 = vmatprep.subr.mxu0 0.0
  %256 = vmatpush1.xpose.msra.mxu0 0.0
  %257 = vmatprep.subr.mxu0 0.0
  %258 = vmatpush1.xpose.msra.mxu0 0.0
  %259 = vmatprep.subr.mxu0 0.0
  %260 = vmatpush1.xpose.msra.mxu0 0.0
  %261 = vmatprep.mubr.f32.mxu0 0.0
  %262 = vmatmul.mubr.f32.gmra.mrb[0].mxu0 %v193
  %v263 = vpop.f32.mrb[0].mxu0
  %v264 = vadd.f32 0.0, %v263
  %v265 = vpop.f32.mrb[0].mxu0
  %266 = vdwg.mxu0
  %268 = vrot.lane.b32.xlu0 %v181, 96
  %v269 = vpop.permute.xlu0 %268
  %v270 = vsel %vm192, %v181, 0
  %v272 = vsel %vm192, %v269, 0
  %274 = vmatprep.subr.mxu0 0.0
  %275 = vmatpush1.xpose.msra.mxu0 %v272
  %276 = vmatprep.subr.mxu0 0.0
  %277 = vmatpush1.xpose.msra.mxu0 0.0
  %278 = vmatprep.subr.mxu0 0.0
  %279 = vmatpush1.xpose.msra.mxu0 0.0
  %280 = vmatprep.subr.mxu0 0.0
  %281 = vmatpush1.xpose.msra.mxu0 0.0
  %282 = vmatprep.subr.mxu0 0.0
  %283 = vmatpush1.xpose.msra.mxu0 0.0
  %284 = vmatprep.subr.mxu0 0.0
  %285 = vmatpush1.xpose.msra.mxu0 0.0
  %286 = vmatprep.subr.mxu0 0.0
  %287 = vmatpush1.xpose.msra.mxu0 0.0
  %288 = vmatprep.subr.mxu0 0.0
  %289 = vmatpush1.xpose.msra.mxu0 0.0
  %290 = vmatprep.subr.mxu0 0.0
  %291 = vmatpush1.xpose.msra.mxu0 0.0
  %292 = vmatprep.subr.mxu0 0.0
  %293 = vmatpush1.xpose.msra.mxu0 0.0
  %294 = vmatprep.subr.mxu0 0.0
  %295 = vmatpush1.xpose.msra.mxu0 0.0
  %296 = vmatprep.subr.mxu0 0.0
  %297 = vmatpush1.xpose.msra.mxu0 0.0
  %298 = vmatprep.subr.mxu0 0.0
  %299 = vmatpush1.xpose.msra.mxu0 0.0
  %300 = vmatprep.subr.mxu0 0.0
  %301 = vmatpush1.xpose.msra.mxu0 0.0
  %302 = vmatprep.subr.mxu0 0.0
  %303 = vmatpush1.xpose.msra.mxu0 0.0
  %304 = vmatprep.subr.mxu0 0.0
  %305 = vmatpush1.xpose.msra.mxu0 0.0
  %306 = vmatprep.subr.mxu0 0.0
  %307 = vmatpush1.xpose.msra.mxu0 0.0
  %308 = vmatprep.subr.mxu0 0.0
  %309 = vmatpush1.xpose.msra.mxu0 0.0
  %310 = vmatprep.subr.mxu0 0.0
  %311 = vmatpush1.xpose.msra.mxu0 0.0
  %312 = vmatprep.subr.mxu0 0.0
  %313 = vmatpush1.xpose.msra.mxu0 0.0
  %314 = vmatprep.subr.mxu0 0.0
  %315 = vmatpush1.xpose.msra.mxu0 0.0
  %316 = vmatprep.subr.mxu0 0.0
  %317 = vmatpush1.xpose.msra.mxu0 0.0
  %318 = vmatprep.subr.mxu0 0.0
  %319 = vmatpush1.xpose.msra.mxu0 0.0
  %320 = vmatprep.subr.mxu0 0.0
  %321 = vmatpush1.xpose.msra.mxu0 0.0
  %322 = vmatprep.subr.mxu0 0.0
  %323 = vmatpush1.xpose.msra.mxu0 0.0
  %324 = vmatprep.subr.mxu0 0.0
  %325 = vmatpush1.xpose.msra.mxu0 0.0
  %326 = vmatprep.subr.mxu0 0.0
  %327 = vmatpush1.xpose.msra.mxu0 0.0
  %328 = vmatprep.subr.mxu0 0.0
  %329 = vmatpush1.xpose.msra.mxu0 0.0
  %330 = vmatprep.subr.mxu0 0.0
  %331 = vmatpush1.xpose.msra.mxu0 0.0
  %332 = vmatprep.subr.mxu0 0.0
  %333 = vmatpush1.xpose.msra.mxu0 0.0
  %334 = vmatprep.subr.mxu0 0.0
  %335 = vmatpush1.xpose.msra.mxu0 0.0
  %336 = vmatprep.subr.mxu0 0.0
  %337 = vmatpush1.xpose.msra.mxu0 0.0
  %338 = vmatprep.mubr.f32.mxu0 0.0
  %339 = vmatmul.mubr.f32.gmra.mrb[0].mxu0 %v270
  %v340 = vpop.f32.mrb[0].mxu0
  %v341 = vadd.f32 0.0, %v340
  %v342 = vpop.f32.mrb[0].mxu0
  %343 = vdwg.mxu0
  %v344 = vmul.f32 %v264, 0.25
  %v345 = vmul.f32 %v341, 0.25
  %v346 = vsel %vm188, %v344, -1e+30
  %v347 = vsel %vm188, %v345, -1e+30
  %vm348 = vcmask 64512
  %v349 = vsel %vm348, %v346, -inf
  %350 = vmax.xlane.f32.xlu0 %v349
  %v351 = vpop.xlane.xlu0 %350
  %v352 = vsel %vm348, %v347, -inf
  %353 = vmax.xlane.f32.xlu0 %v352
  %v354 = vpop.xlane.xlu0 %353
  %v355 = vsub.f32 %v346, %v351
  %v356 = vsub.f32 %v347, %v354
  %v357 = vmul.f32 %v355, 1.442695
  %v358 = vpow.pop %v357
  %v359 = vmul.f32 %v356, 1.442695
  %v360 = vpow.pop %v359
  %v361 = vsel %vm348, %v358, 0.0
  %362 = vadd.xlane.f32.xlu0 %v361
  %v363 = vpop.xlane.xlu0 %362
  %v364 = vsel %vm348, %v360, 0.0
  %365 = vadd.xlane.f32.xlu0 %v364
  %v366 = vpop.xlane.xlu0 %365
  %367 = vrot.lane.b32.xlu0 %v176, 64
  %v368 = vpop.permute.xlu0 %367
  %v371 = vsel %vm348, %v358, 0
  %373 = vmatprep.subr.mxu0 0.0
  %374 = vmatpush1.msra.mxu0 %v368
  %375 = vmatprep.subr.mxu0 0.0
  %376 = vmatpush1.msra.mxu0 0.0
  %377 = vmatprep.subr.mxu0 0.0
  %378 = vmatpush1.msra.mxu0 0.0
  %379 = vmatprep.subr.mxu0 0.0
  %380 = vmatpush1.msra.mxu0 0.0
  %381 = vmatprep.subr.mxu0 0.0
  %382 = vmatpush1.msra.mxu0 0.0
  %383 = vmatprep.subr.mxu0 0.0
  %384 = vmatpush1.msra.mxu0 0.0
  %385 = vmatprep.subr.mxu0 0.0
  %386 = vmatpush1.msra.mxu0 0.0
  %387 = vmatprep.subr.mxu0 0.0
  %388 = vmatpush1.msra.mxu0 0.0
  %389 = vmatprep.subr.mxu0 0.0
  %390 = vmatpush1.msra.mxu0 0.0
  %391 = vmatprep.subr.mxu0 0.0
  %392 = vmatpush1.msra.mxu0 0.0
  %393 = vmatprep.subr.mxu0 0.0
  %394 = vmatpush1.msra.mxu0 0.0
  %395 = vmatprep.subr.mxu0 0.0
  %396 = vmatpush1.msra.mxu0 0.0
  %397 = vmatprep.subr.mxu0 0.0
  %398 = vmatpush1.msra.mxu0 0.0
  %399 = vmatprep.subr.mxu0 0.0
  %400 = vmatpush1.msra.mxu0 0.0
  %401 = vmatprep.subr.mxu0 0.0
  %402 = vmatpush1.msra.mxu0 0.0
  %403 = vmatprep.subr.mxu0 0.0
  %404 = vmatpush1.msra.mxu0 0.0
  %405 = vmatprep.subr.mxu0 0.0
  %406 = vmatpush1.msra.mxu0 0.0
  %407 = vmatprep.subr.mxu0 0.0
  %408 = vmatpush1.msra.mxu0 0.0
  %409 = vmatprep.subr.mxu0 0.0
  %410 = vmatpush1.msra.mxu0 0.0
  %411 = vmatprep.subr.mxu0 0.0
  %412 = vmatpush1.msra.mxu0 0.0
  %413 = vmatprep.subr.mxu0 0.0
  %414 = vmatpush1.msra.mxu0 0.0
  %415 = vmatprep.subr.mxu0 0.0
  %416 = vmatpush1.msra.mxu0 0.0
  %417 = vmatprep.subr.mxu0 0.0
  %418 = vmatpush1.msra.mxu0 0.0
  %419 = vmatprep.subr.mxu0 0.0
  %420 = vmatpush1.msra.mxu0 0.0
  %421 = vmatprep.subr.mxu0 0.0
  %422 = vmatpush1.msra.mxu0 0.0
  %423 = vmatprep.subr.mxu0 0.0
  %424 = vmatpush1.msra.mxu0 0.0
  %425 = vmatprep.subr.mxu0 0.0
  %426 = vmatpush1.msra.mxu0 0.0
  %427 = vmatprep.subr.mxu0 0.0
  %428 = vmatpush1.msra.mxu0 0.0
  %429 = vmatprep.subr.mxu0 0.0
  %430 = vmatpush1.msra.mxu0 0.0
  %431 = vmatprep.subr.mxu0 0.0
  %432 = vmatpush1.msra.mxu0 0.0
  %433 = vmatprep.subr.mxu0 0.0
  %434 = vmatpush1.msra.mxu0 0.0
  %435 = vmatprep.subr.mxu0 0.0
  %436 = vmatpush1.msra.mxu0 0.0
  %437 = vmatprep.mubr.f32.mxu0 0.0
  %438 = vmatmul.mubr.f32.gmra.mrb[0].mxu0 %v371
  %v439 = vpop.f32.mrb[0].mxu0
  %v440 = vadd.f32 0.0, %v439
  %v441 = vpop.f32.mrb[0].mxu0
  %442 = vdwg.mxu0
  %443 = vrot.lane.b32.xlu0 %v181, 64
  %v444 = vpop.permute.xlu0 %443
  %v447 = vsel %vm348, %v360, 0
  %449 = vmatprep.subr.mxu0 0.0
  %450 = vmatpush1.msra.mxu0 %v444
  %451 = vmatprep.subr.mxu0 0.0
  %452 = vmatpush1.msra.mxu0 0.0
  %453 = vmatprep.subr.mxu0 0.0
  %454 = vmatpush1.msra.mxu0 0.0
  %455 = vmatprep.subr.mxu0 0.0
  %456 = vmatpush1.msra.mxu0 0.0
  %457 = vmatprep.subr.mxu0 0.0
  %458 = vmatpush1.msra.mxu0 0.0
  %459 = vmatprep.subr.mxu0 0.0
  %460 = vmatpush1.msra.mxu0 0.0
  %461 = vmatprep.subr.mxu0 0.0
  %462 = vmatpush1.msra.mxu0 0.0
  %463 = vmatprep.subr.mxu0 0.0
  %464 = vmatpush1.msra.mxu0 0.0
  %465 = vmatprep.subr.mxu0 0.0
  %466 = vmatpush1.msra.mxu0 0.0
  %467 = vmatprep.subr.mxu0 0.0
  %468 = vmatpush1.msra.mxu0 0.0
  %469 = vmatprep.subr.mxu0 0.0
  %470 = vmatpush1.msra.mxu0 0.0
  %471 = vmatprep.subr.mxu0 0.0
  %472 = vmatpush1.msra.mxu0 0.0
  %473 = vmatprep.subr.mxu0 0.0
  %474 = vmatpush1.msra.mxu0 0.0
  %475 = vmatprep.subr.mxu0 0.0
  %476 = vmatpush1.msra.mxu0 0.0
  %477 = vmatprep.subr.mxu0 0.0
  %478 = vmatpush1.msra.mxu0 0.0
  %479 = vmatprep.subr.mxu0 0.0
  %480 = vmatpush1.msra.mxu0 0.0
  %481 = vmatprep.subr.mxu0 0.0
  %482 = vmatpush1.msra.mxu0 0.0
  %483 = vmatprep.subr.mxu0 0.0
  %484 = vmatpush1.msra.mxu0 0.0
  %485 = vmatprep.subr.mxu0 0.0
  %486 = vmatpush1.msra.mxu0 0.0
  %487 = vmatprep.subr.mxu0 0.0
  %488 = vmatpush1.msra.mxu0 0.0
  %489 = vmatprep.subr.mxu0 0.0
  %490 = vmatpush1.msra.mxu0 0.0
  %491 = vmatprep.subr.mxu0 0.0
  %492 = vmatpush1.msra.mxu0 0.0
  %493 = vmatprep.subr.mxu0 0.0
  %494 = vmatpush1.msra.mxu0 0.0
  %495 = vmatprep.subr.mxu0 0.0
  %496 = vmatpush1.msra.mxu0 0.0
  %497 = vmatprep.subr.mxu0 0.0
  %498 = vmatpush1.msra.mxu0 0.0
  %499 = vmatprep.subr.mxu0 0.0
  %500 = vmatpush1.msra.mxu0 0.0
  %501 = vmatprep.subr.mxu0 0.0
  %502 = vmatpush1.msra.mxu0 0.0
  %503 = vmatprep.subr.mxu0 0.0
  %504 = vmatpush1.msra.mxu0 0.0
  %505 = vmatprep.subr.mxu0 0.0
  %506 = vmatpush1.msra.mxu0 0.0
  %507 = vmatprep.subr.mxu0 0.0
  %508 = vmatpush1.msra.mxu0 0.0
  %509 = vmatprep.subr.mxu0 0.0
  %510 = vmatpush1.msra.mxu0 0.0
  %511 = vmatprep.subr.mxu0 0.0
  %512 = vmatpush1.msra.mxu0 0.0
  %513 = vmatprep.mubr.f32.mxu0 0.0
  %514 = vmatmul.mubr.f32.gmra.mrb[0].mxu0 %v447
  %v515 = vpop.f32.mrb[0].mxu0
  %v516 = vadd.f32 0.0, %v515
  %v517 = vpop.f32.mrb[0].mxu0
  %518 = vdwg.mxu0
  %v519 = vrcp.pop %v363
  %v520 = vrcp.pop %v366
  %v521 = vmul.f32 %v440, %v519
  %v522 = vmul.f32 %v516, %v520
  %523 = vrot.lane.b32.xlu0 %v176, 112
  %v524 = vpop.permute.xlu0 %523
  %525 = vrot.lane.b32.xlu0 %v176, 80
  %v526 = vpop.permute.xlu0 %525
  %v527 = vsel %vm192, %v524, 0
  %v529 = vsel %vm192, %v526, 0
  %531 = vmatprep.subr.mxu0 0.0
  %532 = vmatpush1.xpose.msra.mxu0 %v529
  %533 = vmatprep.subr.mxu0 0.0
  %534 = vmatpush1.xpose.msra.mxu0 0.0
  %535 = vmatprep.subr.mxu0 0.0
  %536 = vmatpush1.xpose.msra.mxu0 0.0
  %537 = vmatprep.subr.mxu0 0.0
  %538 = vmatpush1.xpose.msra.mxu0 0.0
  %539 = vmatprep.subr.mxu0 0.0
  %540 = vmatpush1.xpose.msra.mxu0 0.0
  %541 = vmatprep.subr.mxu0 0.0
  %542 = vmatpush1.xpose.msra.mxu0 0.0
  %543 = vmatprep.subr.mxu0 0.0
  %544 = vmatpush1.xpose.msra.mxu0 0.0
  %545 = vmatprep.subr.mxu0 0.0
  %546 = vmatpush1.xpose.msra.mxu0 0.0
  %547 = vmatprep.subr.mxu0 0.0
  %548 = vmatpush1.xpose.msra.mxu0 0.0
  %549 = vmatprep.subr.mxu0 0.0
  %550 = vmatpush1.xpose.msra.mxu0 0.0
  %551 = vmatprep.subr.mxu0 0.0
  %552 = vmatpush1.xpose.msra.mxu0 0.0
  %553 = vmatprep.subr.mxu0 0.0
  %554 = vmatpush1.xpose.msra.mxu0 0.0
  %555 = vmatprep.subr.mxu0 0.0
  %556 = vmatpush1.xpose.msra.mxu0 0.0
  %557 = vmatprep.subr.mxu0 0.0
  %558 = vmatpush1.xpose.msra.mxu0 0.0
  %559 = vmatprep.subr.mxu0 0.0
  %560 = vmatpush1.xpose.msra.mxu0 0.0
  %561 = vmatprep.subr.mxu0 0.0
  %562 = vmatpush1.xpose.msra.mxu0 0.0
  %563 = vmatprep.subr.mxu0 0.0
  %564 = vmatpush1.xpose.msra.mxu0 0.0
  %565 = vmatprep.subr.mxu0 0.0
  %566 = vmatpush1.xpose.msra.mxu0 0.0
  %567 = vmatprep.subr.mxu0 0.0
  %568 = vmatpush1.xpose.msra.mxu0 0.0
  %569 = vmatprep.subr.mxu0 0.0
  %570 = vmatpush1.xpose.msra.mxu0 0.0
  %571 = vmatprep.subr.mxu0 0.0
  %572 = vmatpush1.xpose.msra.mxu0 0.0
  %573 = vmatprep.subr.mxu0 0.0
  %574 = vmatpush1.xpose.msra.mxu0 0.0
  %575 = vmatprep.subr.mxu0 0.0
  %576 = vmatpush1.xpose.msra.mxu0 0.0
  %577 = vmatprep.subr.mxu0 0.0
  %578 = vmatpush1.xpose.msra.mxu0 0.0
  %579 = vmatprep.subr.mxu0 0.0
  %580 = vmatpush1.xpose.msra.mxu0 0.0
  %581 = vmatprep.subr.mxu0 0.0
  %582 = vmatpush1.xpose.msra.mxu0 0.0
  %583 = vmatprep.subr.mxu0 0.0
  %584 = vmatpush1.xpose.msra.mxu0 0.0
  %585 = vmatprep.subr.mxu0 0.0
  %586 = vmatpush1.xpose.msra.mxu0 0.0
  %587 = vmatprep.subr.mxu0 0.0
  %588 = vmatpush1.xpose.msra.mxu0 0.0
  %589 = vmatprep.subr.mxu0 0.0
  %590 = vmatpush1.xpose.msra.mxu0 0.0
  %591 = vmatprep.subr.mxu0 0.0
  %592 = vmatpush1.xpose.msra.mxu0 0.0
  %593 = vmatprep.subr.mxu0 0.0
  %594 = vmatpush1.xpose.msra.mxu0 0.0
  %595 = vmatprep.mubr.f32.mxu0 0.0
  %596 = vmatmul.mubr.f32.gmra.mrb[0].mxu0 %v527
  %v597 = vpop.f32.mrb[0].mxu0
  %v598 = vadd.f32 0.0, %v597
  %v599 = vpop.f32.mrb[0].mxu0
  %600 = vdwg.mxu0
  %601 = vrot.lane.b32.xlu0 %v181, 112
  %v602 = vpop.permute.xlu0 %601
  %603 = vrot.lane.b32.xlu0 %v181, 80
  %v604 = vpop.permute.xlu0 %603
  %v605 = vsel %vm192, %v602, 0
  %v607 = vsel %vm192, %v604, 0
  %609 = vmatprep.subr.mxu0 0.0
  %610 = vmatpush1.xpose.msra.mxu0 %v607
  %611 = vmatprep.subr.mxu0 0.0
  %612 = vmatpush1.xpose.msra.mxu0 0.0
  %613 = vmatprep.subr.mxu0 0.0
  %614 = vmatpush1.xpose.msra.mxu0 0.0
  %615 = vmatprep.subr.mxu0 0.0
  %616 = vmatpush1.xpose.msra.mxu0 0.0
  %617 = vmatprep.subr.mxu0 0.0
  %618 = vmatpush1.xpose.msra.mxu0 0.0
  %619 = vmatprep.subr.mxu0 0.0
  %620 = vmatpush1.xpose.msra.mxu0 0.0
  %621 = vmatprep.subr.mxu0 0.0
  %622 = vmatpush1.xpose.msra.mxu0 0.0
  %623 = vmatprep.subr.mxu0 0.0
  %624 = vmatpush1.xpose.msra.mxu0 0.0
  %625 = vmatprep.subr.mxu0 0.0
  %626 = vmatpush1.xpose.msra.mxu0 0.0
  %627 = vmatprep.subr.mxu0 0.0
  %628 = vmatpush1.xpose.msra.mxu0 0.0
  %629 = vmatprep.subr.mxu0 0.0
  %630 = vmatpush1.xpose.msra.mxu0 0.0
  %631 = vmatprep.subr.mxu0 0.0
  %632 = vmatpush1.xpose.msra.mxu0 0.0
  %633 = vmatprep.subr.mxu0 0.0
  %634 = vmatpush1.xpose.msra.mxu0 0.0
  %635 = vmatprep.subr.mxu0 0.0
  %636 = vmatpush1.xpose.msra.mxu0 0.0
  %637 = vmatprep.subr.mxu0 0.0
  %638 = vmatpush1.xpose.msra.mxu0 0.0
  %639 = vmatprep.subr.mxu0 0.0
  %640 = vmatpush1.xpose.msra.mxu0 0.0
  %641 = vmatprep.subr.mxu0 0.0
  %642 = vmatpush1.xpose.msra.mxu0 0.0
  %643 = vmatprep.subr.mxu0 0.0
  %644 = vmatpush1.xpose.msra.mxu0 0.0
  %645 = vmatprep.subr.mxu0 0.0
  %646 = vmatpush1.xpose.msra.mxu0 0.0
  %647 = vmatprep.subr.mxu0 0.0
  %648 = vmatpush1.xpose.msra.mxu0 0.0
  %649 = vmatprep.subr.mxu0 0.0
  %650 = vmatpush1.xpose.msra.mxu0 0.0
  %651 = vmatprep.subr.mxu0 0.0
  %652 = vmatpush1.xpose.msra.mxu0 0.0
  %653 = vmatprep.subr.mxu0 0.0
  %654 = vmatpush1.xpose.msra.mxu0 0.0
  %655 = vmatprep.subr.mxu0 0.0
  %656 = vmatpush1.xpose.msra.mxu0 0.0
  %657 = vmatprep.subr.mxu0 0.0
  %658 = vmatpush1.xpose.msra.mxu0 0.0
  %659 = vmatprep.subr.mxu0 0.0
  %660 = vmatpush1.xpose.msra.mxu0 0.0
  %661 = vmatprep.subr.mxu0 0.0
  %662 = vmatpush1.xpose.msra.mxu0 0.0
  %663 = vmatprep.subr.mxu0 0.0
  %664 = vmatpush1.xpose.msra.mxu0 0.0
  %665 = vmatprep.subr.mxu0 0.0
  %666 = vmatpush1.xpose.msra.mxu0 0.0
  %667 = vmatprep.subr.mxu0 0.0
  %668 = vmatpush1.xpose.msra.mxu0 0.0
  %669 = vmatprep.subr.mxu0 0.0
  %670 = vmatpush1.xpose.msra.mxu0 0.0
  %671 = vmatprep.subr.mxu0 0.0
  %672 = vmatpush1.xpose.msra.mxu0 0.0
  %673 = vmatprep.mubr.f32.mxu0 0.0
  %674 = vmatmul.mubr.f32.gmra.mrb[0].mxu0 %v605
  %v675 = vpop.f32.mrb[0].mxu0
  %v676 = vadd.f32 0.0, %v675
  %v677 = vpop.f32.mrb[0].mxu0
  %678 = vdwg.mxu0
  %v679 = vmul.f32 %v598, 0.25
  %v680 = vmul.f32 %v676, 0.25
  %v681 = vsel %vm188, %v679, -1e+30
  %v682 = vsel %vm188, %v680, -1e+30
  %v683 = vsel %vm348, %v681, -inf
  %684 = vmax.xlane.f32.xlu0 %v683
  %v685 = vpop.xlane.xlu0 %684
  %v686 = vsel %vm348, %v682, -inf
  %687 = vmax.xlane.f32.xlu0 %v686
  %v688 = vpop.xlane.xlu0 %687
  %v689 = vsub.f32 %v681, %v685
  %v690 = vsub.f32 %v682, %v688
  %v691 = vmul.f32 %v689, 1.442695
  %v692 = vpow.pop %v691
  %v693 = vmul.f32 %v690, 1.442695
  %v694 = vpow.pop %v693
  %v695 = vsel %vm348, %v692, 0.0
  %696 = vadd.xlane.f32.xlu0 %v695
  %v697 = vpop.xlane.xlu0 %696
  %v698 = vsel %vm348, %v694, 0.0
  %699 = vadd.xlane.f32.xlu0 %v698
  %v700 = vpop.xlane.xlu0 %699
  %701 = vrot.lane.b32.xlu0 %v176, 48
  %v702 = vpop.permute.xlu0 %701
  %v705 = vsel %vm348, %v692, 0
  %707 = vmatprep.subr.mxu0 0.0
  %708 = vmatpush1.msra.mxu0 %v702
  %709 = vmatprep.subr.mxu0 0.0
  %710 = vmatpush1.msra.mxu0 0.0
  %711 = vmatprep.subr.mxu0 0.0
  %712 = vmatpush1.msra.mxu0 0.0
  %713 = vmatprep.subr.mxu0 0.0
  %714 = vmatpush1.msra.mxu0 0.0
  %715 = vmatprep.subr.mxu0 0.0
  %716 = vmatpush1.msra.mxu0 0.0
  %717 = vmatprep.subr.mxu0 0.0
  %718 = vmatpush1.msra.mxu0 0.0
  %719 = vmatprep.subr.mxu0 0.0
  %720 = vmatpush1.msra.mxu0 0.0
  %721 = vmatprep.subr.mxu0 0.0
  %722 = vmatpush1.msra.mxu0 0.0
  %723 = vmatprep.subr.mxu0 0.0
  %724 = vmatpush1.msra.mxu0 0.0
  %725 = vmatprep.subr.mxu0 0.0
  %726 = vmatpush1.msra.mxu0 0.0
  %727 = vmatprep.subr.mxu0 0.0
  %728 = vmatpush1.msra.mxu0 0.0
  %729 = vmatprep.subr.mxu0 0.0
  %730 = vmatpush1.msra.mxu0 0.0
  %731 = vmatprep.subr.mxu0 0.0
  %732 = vmatpush1.msra.mxu0 0.0
  %733 = vmatprep.subr.mxu0 0.0
  %734 = vmatpush1.msra.mxu0 0.0
  %735 = vmatprep.subr.mxu0 0.0
  %736 = vmatpush1.msra.mxu0 0.0
  %737 = vmatprep.subr.mxu0 0.0
  %738 = vmatpush1.msra.mxu0 0.0
  %739 = vmatprep.subr.mxu0 0.0
  %740 = vmatpush1.msra.mxu0 0.0
  %741 = vmatprep.subr.mxu0 0.0
  %742 = vmatpush1.msra.mxu0 0.0
  %743 = vmatprep.subr.mxu0 0.0
  %744 = vmatpush1.msra.mxu0 0.0
  %745 = vmatprep.subr.mxu0 0.0
  %746 = vmatpush1.msra.mxu0 0.0
  %747 = vmatprep.subr.mxu0 0.0
  %748 = vmatpush1.msra.mxu0 0.0
  %749 = vmatprep.subr.mxu0 0.0
  %750 = vmatpush1.msra.mxu0 0.0
  %751 = vmatprep.subr.mxu0 0.0
  %752 = vmatpush1.msra.mxu0 0.0
  %753 = vmatprep.subr.mxu0 0.0
  %754 = vmatpush1.msra.mxu0 0.0
  %755 = vmatprep.subr.mxu0 0.0
  %756 = vmatpush1.msra.mxu0 0.0
  %757 = vmatprep.subr.mxu0 0.0
  %758 = vmatpush1.msra.mxu0 0.0
  %759 = vmatprep.subr.mxu0 0.0
  %760 = vmatpush1.msra.mxu0 0.0
  %761 = vmatprep.subr.mxu0 0.0
  %762 = vmatpush1.msra.mxu0 0.0
  %763 = vmatprep.subr.mxu0 0.0
  %764 = vmatpush1.msra.mxu0 0.0
  %765 = vmatprep.subr.mxu0 0.0
  %766 = vmatpush1.msra.mxu0 0.0
  %767 = vmatprep.subr.mxu0 0.0
  %768 = vmatpush1.msra.mxu0 0.0
  %769 = vmatprep.subr.mxu0 0.0
  %770 = vmatpush1.msra.mxu0 0.0
  %771 = vmatprep.mubr.f32.mxu0 0.0
  %772 = vmatmul.mubr.f32.gmra.mrb[0].mxu0 %v705
  %v773 = vpop.f32.mrb[0].mxu0
  %v774 = vadd.f32 0.0, %v773
  %v775 = vpop.f32.mrb[0].mxu0
  %776 = vdwg.mxu0
  %777 = vrot.lane.b32.xlu0 %v181, 48
  %v778 = vpop.permute.xlu0 %777
  %v781 = vsel %vm348, %v694, 0
  %783 = vmatprep.subr.mxu0 0.0
  %784 = vmatpush1.msra.mxu0 %v778
  %785 = vmatprep.subr.mxu0 0.0
  %786 = vmatpush1.msra.mxu0 0.0
  %787 = vmatprep.subr.mxu0 0.0
  %788 = vmatpush1.msra.mxu0 0.0
  %789 = vmatprep.subr.mxu0 0.0
  %790 = vmatpush1.msra.mxu0 0.0
  %791 = vmatprep.subr.mxu0 0.0
  %792 = vmatpush1.msra.mxu0 0.0
  %793 = vmatprep.subr.mxu0 0.0
  %794 = vmatpush1.msra.mxu0 0.0
  %795 = vmatprep.subr.mxu0 0.0
  %796 = vmatpush1.msra.mxu0 0.0
  %797 = vmatprep.subr.mxu0 0.0
  %798 = vmatpush1.msra.mxu0 0.0
  %799 = vmatprep.subr.mxu0 0.0
  %800 = vmatpush1.msra.mxu0 0.0
  %801 = vmatprep.subr.mxu0 0.0
  %802 = vmatpush1.msra.mxu0 0.0
  %803 = vmatprep.subr.mxu0 0.0
  %804 = vmatpush1.msra.mxu0 0.0
  %805 = vmatprep.subr.mxu0 0.0
  %806 = vmatpush1.msra.mxu0 0.0
  %807 = vmatprep.subr.mxu0 0.0
  %808 = vmatpush1.msra.mxu0 0.0
  %809 = vmatprep.subr.mxu0 0.0
  %810 = vmatpush1.msra.mxu0 0.0
  %811 = vmatprep.subr.mxu0 0.0
  %812 = vmatpush1.msra.mxu0 0.0
  %813 = vmatprep.subr.mxu0 0.0
  %814 = vmatpush1.msra.mxu0 0.0
  %815 = vmatprep.subr.mxu0 0.0
  %816 = vmatpush1.msra.mxu0 0.0
  %817 = vmatprep.subr.mxu0 0.0
  %818 = vmatpush1.msra.mxu0 0.0
  %819 = vmatprep.subr.mxu0 0.0
  %820 = vmatpush1.msra.mxu0 0.0
  %821 = vmatprep.subr.mxu0 0.0
  %822 = vmatpush1.msra.mxu0 0.0
  %823 = vmatprep.subr.mxu0 0.0
  %824 = vmatpush1.msra.mxu0 0.0
  %825 = vmatprep.subr.mxu0 0.0
  %826 = vmatpush1.msra.mxu0 0.0
  %827 = vmatprep.subr.mxu0 0.0
  %828 = vmatpush1.msra.mxu0 0.0
  %829 = vmatprep.subr.mxu0 0.0
  %830 = vmatpush1.msra.mxu0 0.0
  %831 = vmatprep.subr.mxu0 0.0
  %832 = vmatpush1.msra.mxu0 0.0
  %833 = vmatprep.subr.mxu0 0.0
  %834 = vmatpush1.msra.mxu0 0.0
  %835 = vmatprep.subr.mxu0 0.0
  %836 = vmatpush1.msra.mxu0 0.0
  %837 = vmatprep.subr.mxu0 0.0
  %838 = vmatpush1.msra.mxu0 0.0
  %839 = vmatprep.subr.mxu0 0.0
  %840 = vmatpush1.msra.mxu0 0.0
  %841 = vmatprep.subr.mxu0 0.0
  %842 = vmatpush1.msra.mxu0 0.0
  %843 = vmatprep.subr.mxu0 0.0
  %844 = vmatpush1.msra.mxu0 0.0
  %845 = vmatprep.subr.mxu0 0.0
  %846 = vmatpush1.msra.mxu0 0.0
  %847 = vmatprep.mubr.f32.mxu0 0.0
  %848 = vmatmul.mubr.f32.gmra.mrb[0].mxu0 %v781
  %v849 = vpop.f32.mrb[0].mxu0
  %v850 = vadd.f32 0.0, %v849
  %v851 = vpop.f32.mrb[0].mxu0
  %852 = vdwg.mxu0
  %v853 = vrcp.pop %v697
  %v854 = vrcp.pop %v700
  %v855 = vmul.f32 %v774, %v853
  %v856 = vmul.f32 %v850, %v854
  %859 = vrot.lane.b32.xlu0 %v855, 16
  %v860 = vpop.permute.xlu0 %859
  %861 = vrot.lane.b32.xlu0 %v856, 16
  %v862 = vpop.permute.xlu0 %861
  %v865 = vsel %vm192, %v521, %v860
  %v866 = vsel %vm192, %v522, %v862
  %v867 = vld [vmem:[%s5] sm:$0xff]
  %v868 = vld [vmem:[%s5 + $0x8] sm:$0xff]
  %v869 = vld [vmem:[%s5 + $0x10] sm:$0xff]
  %v870 = vld [vmem:[%s5 + $0x18] sm:$0xff]
  %v871 = vld [vmem:[%s6] sm:$0x1]
  %v873 = vlaneseq
  %v874 = vshrl.u32 %v873, 7
  %v875 = vsub.s32 0, %v874
  %v876 = vrot.slane %v871, %v875
  %v879 = vsel %vm48, %v865, 0
  %v882 = vsel %vm48, %v866, 0
  %884 = vmatprep.subr.mxu0 0.0
  %885 = vmatpush1.msra.mxu0 %v867
  %886 = vmatprep.subr.mxu0 0.0
  %887 = vmatpush1.msra.mxu0 %v868
  %888 = vmatprep.subr.mxu0 0.0
  %889 = vmatpush1.msra.mxu0 %v869
  %890 = vmatprep.subr.mxu0 0.0
  %891 = vmatpush1.msra.mxu0 %v870
  %892 = vmatprep.subr.mxu0 0.0
  %893 = vmatpush1.msra.mxu0 0.0
  %894 = vmatprep.subr.mxu0 0.0
  %895 = vmatpush1.msra.mxu0 0.0
  %896 = vmatprep.subr.mxu0 0.0
  %897 = vmatpush1.msra.mxu0 0.0
  %898 = vmatprep.subr.mxu0 0.0
  %899 = vmatpush1.msra.mxu0 0.0
  %900 = vmatprep.subr.mxu0 0.0
  %901 = vmatpush1.msra.mxu0 0.0
  %902 = vmatprep.subr.mxu0 0.0
  %903 = vmatpush1.msra.mxu0 0.0
  %904 = vmatprep.subr.mxu0 0.0
  %905 = vmatpush1.msra.mxu0 0.0
  %906 = vmatprep.subr.mxu0 0.0
  %907 = vmatpush1.msra.mxu0 0.0
  %908 = vmatprep.subr.mxu0 0.0
  %909 = vmatpush1.msra.mxu0 0.0
  %910 = vmatprep.subr.mxu0 0.0
  %911 = vmatpush1.msra.mxu0 0.0
  %912 = vmatprep.subr.mxu0 0.0
  %913 = vmatpush1.msra.mxu0 0.0
  %914 = vmatprep.subr.mxu0 0.0
  %915 = vmatpush1.msra.mxu0 0.0
  %916 = vmatprep.subr.mxu0 0.0
  %917 = vmatpush1.msra.mxu0 0.0
  %918 = vmatprep.subr.mxu0 0.0
  %919 = vmatpush1.msra.mxu0 0.0
  %920 = vmatprep.subr.mxu0 0.0
  %921 = vmatpush1.msra.mxu0 0.0
  %922 = vmatprep.subr.mxu0 0.0
  %923 = vmatpush1.msra.mxu0 0.0
  %924 = vmatprep.subr.mxu0 0.0
  %925 = vmatpush1.msra.mxu0 0.0
  %926 = vmatprep.subr.mxu0 0.0
  %927 = vmatpush1.msra.mxu0 0.0
  %928 = vmatprep.subr.mxu0 0.0
  %929 = vmatpush1.msra.mxu0 0.0
  %930 = vmatprep.subr.mxu0 0.0
  %931 = vmatpush1.msra.mxu0 0.0
  %932 = vmatprep.subr.mxu0 0.0
  %933 = vmatpush1.msra.mxu0 0.0
  %934 = vmatprep.subr.mxu0 0.0
  %935 = vmatpush1.msra.mxu0 0.0
  %936 = vmatprep.subr.mxu0 0.0
  %937 = vmatpush1.msra.mxu0 0.0
  %938 = vmatprep.subr.mxu0 0.0
  %939 = vmatpush1.msra.mxu0 0.0
  %940 = vmatprep.subr.mxu0 0.0
  %941 = vmatpush1.msra.mxu0 0.0
  %942 = vmatprep.subr.mxu0 0.0
  %943 = vmatpush1.msra.mxu0 0.0
  %944 = vmatprep.subr.mxu0 0.0
  %945 = vmatpush1.msra.mxu0 0.0
  %946 = vmatprep.subr.mxu0 0.0
  %947 = vmatpush1.msra.mxu0 0.0
  %948 = vmatprep.mubr.f32.mxu0 0.0
  %949 = vmatmul.mubr.f32.gmra.mrb[0].mxu0 %v879
  %v950 = vpop.f32.mrb[0].mxu0
  %v951 = vadd.f32 %v876, %v950
  %v952 = vpop.f32.mrb[0].mxu0
  %953 = vmatprep.mubr.f32.mxu0 0.0
  %954 = vmatmul.mubr.f32.gmra.mrb[0].mxu0 %v882
  %v955 = vpop.f32.mrb[0].mxu0
  %v956 = vadd.f32 %v876, %v955
  %v957 = vpop.f32.mrb[0].mxu0
  %958 = vdwg.mxu0
  %v959 = vadd.f32 %v44, %v951
  %v960 = vadd.f32 %v45, %v956
  %v961 = vld [vmem:[%s7] sm:$0x1]
  %v962 = vld [vmem:[%s8] sm:$0x1]
  %v963 = vsel %vm48, %v959, 0.0
  %964 = vadd.xlane.f32.xlu0 %v963
  %v965 = vpop.xlane.xlu0 %964
  %v966 = vsel %vm48, %v960, 0.0
  %967 = vadd.xlane.f32.xlu0 %v966
  %v968 = vpop.xlane.xlu0 %967
  %v969 = vmul.f32 %v965, %v55
  %v970 = vmul.f32 %v968, %v55
  %v971 = vsub.f32 %v959, %v969
  %v972 = vsub.f32 %v960, %v970
  %v973 = vmul.f32 %v971, %v971
  %v974 = vmul.f32 %v972, %v972
  %v975 = vsel %vm48, %v973, 0.0
  %976 = vadd.xlane.f32.xlu0 %v975
  %v977 = vpop.xlane.xlu0 %976
  %v978 = vsel %vm48, %v974, 0.0
  %979 = vadd.xlane.f32.xlu0 %v978
  %v980 = vpop.xlane.xlu0 %979
  %v981 = vmul.f32 %v977, %v55
  %v982 = vmul.f32 %v980, %v55
  %v983 = vadd.f32 %v981, 1e-05
  %v984 = vadd.f32 %v982, 1e-05
  %v985 = vrsqrt.pop %v983
  %v986 = vrsqrt.pop %v984
  %v987 = vmul.f32 %v971, %v985
  %v988 = vmul.f32 %v972, %v986
  %v990 = vlaneseq
  %v991 = vshrl.u32 %v990, 7
  %v992 = vsub.s32 0, %v991
  %v993 = vrot.slane %v961, %v992
  %v995 = vmul.f32 %v987, %v993
  %v996 = vmul.f32 %v988, %v993
  %v998 = vlaneseq
  %v999 = vshrl.u32 %v998, 7
  %v1000 = vsub.s32 0, %v999
  %v1001 = vrot.slane %v962, %v1000
  %v1003 = vadd.f32 %v995, %v1001
  %v1004 = vadd.f32 %v996, %v1001
  %v1005 = vld [vmem:[%s9] sm:$0xff]
  %v1006 = vld [vmem:[%s9 + $0x8] sm:$0xff]
  %v1007 = vld [vmem:[%s9 + $0x10] sm:$0xff]
  %v1008 = vld [vmem:[%s9 + $0x18] sm:$0xff]
  %v1009 = vld [vmem:[%s10] sm:$0x1]
  %v1011 = vlaneseq
  %v1012 = vshrl.u32 %v1011, 7
  %v1013 = vsub.s32 0, %v1012
  %v1014 = vrot.slane %v1009, %v1013
  %v1017 = vsel %vm48, %v1003, 0
  %v1020 = vsel %vm48, %v1004, 0
  %1022 = vmatprep.subr.mxu0 0.0
  %1023 = vmatpush1.msra.mxu0 %v1005
  %1024 = vmatprep.subr.mxu0 0.0
  %1025 = vmatpush1.msra.mxu0 %v1006
  %1026 = vmatprep.subr.mxu0 0.0
  %1027 = vmatpush1.msra.mxu0 %v1007
  %1028 = vmatprep.subr.mxu0 0.0
  %1029 = vmatpush1.msra.mxu0 %v1008
  %1030 = vmatprep.subr.mxu0 0.0
  %1031 = vmatpush1.msra.mxu0 0.0
  %1032 = vmatprep.subr.mxu0 0.0
  %1033 = vmatpush1.msra.mxu0 0.0
  %1034 = vmatprep.subr.mxu0 0.0
  %1035 = vmatpush1.msra.mxu0 0.0
  %1036 = vmatprep.subr.mxu0 0.0
  %1037 = vmatpush1.msra.mxu0 0.0
  %1038 = vmatprep.subr.mxu0 0.0
  %1039 = vmatpush1.msra.mxu0 0.0
  %1040 = vmatprep.subr.mxu0 0.0
  %1041 = vmatpush1.msra.mxu0 0.0
  %1042 = vmatprep.subr.mxu0 0.0
  %1043 = vmatpush1.msra.mxu0 0.0
  %1044 = vmatprep.subr.mxu0 0.0
  %1045 = vmatpush1.msra.mxu0 0.0
  %1046 = vmatprep.subr.mxu0 0.0
  %1047 = vmatpush1.msra.mxu0 0.0
  %1048 = vmatprep.subr.mxu0 0.0
  %1049 = vmatpush1.msra.mxu0 0.0
  %1050 = vmatprep.subr.mxu0 0.0
  %1051 = vmatpush1.msra.mxu0 0.0
  %1052 = vmatprep.subr.mxu0 0.0
  %1053 = vmatpush1.msra.mxu0 0.0
  %1054 = vmatprep.subr.mxu0 0.0
  %1055 = vmatpush1.msra.mxu0 0.0
  %1056 = vmatprep.subr.mxu0 0.0
  %1057 = vmatpush1.msra.mxu0 0.0
  %1058 = vmatprep.subr.mxu0 0.0
  %1059 = vmatpush1.msra.mxu0 0.0
  %1060 = vmatprep.subr.mxu0 0.0
  %1061 = vmatpush1.msra.mxu0 0.0
  %1062 = vmatprep.subr.mxu0 0.0
  %1063 = vmatpush1.msra.mxu0 0.0
  %1064 = vmatprep.subr.mxu0 0.0
  %1065 = vmatpush1.msra.mxu0 0.0
  %1066 = vmatprep.subr.mxu0 0.0
  %1067 = vmatpush1.msra.mxu0 0.0
  %1068 = vmatprep.subr.mxu0 0.0
  %1069 = vmatpush1.msra.mxu0 0.0
  %1070 = vmatprep.subr.mxu0 0.0
  %1071 = vmatpush1.msra.mxu0 0.0
  %1072 = vmatprep.subr.mxu0 0.0
  %1073 = vmatpush1.msra.mxu0 0.0
  %1074 = vmatprep.subr.mxu0 0.0
  %1075 = vmatpush1.msra.mxu0 0.0
  %1076 = vmatprep.subr.mxu0 0.0
  %1077 = vmatpush1.msra.mxu0 0.0
  %1078 = vmatprep.subr.mxu0 0.0
  %1079 = vmatpush1.msra.mxu0 0.0
  %1080 = vmatprep.subr.mxu0 0.0
  %1081 = vmatpush1.msra.mxu0 0.0
  %1082 = vmatprep.subr.mxu0 0.0
  %1083 = vmatpush1.msra.mxu0 0.0
  %1084 = vmatprep.subr.mxu0 0.0
  %1085 = vmatpush1.msra.mxu0 0.0
  %1086 = vmatprep.mubr.f32.mxu0 0.0
  %1087 = vmatmul.mubr.f32.gmra.mrb[0].mxu0 %v1017
  %v1088 = vpop.f32.mrb[0].mxu0
  %v1089 = vadd.f32 %v1014, %v1088
  %v1090 = vpop.f32.mrb[0].mxu0
  %1091 = vmatprep.mubr.f32.mxu0 0.0
  %1092 = vmatmul.mubr.f32.gmra.mrb[0].mxu0 %v1020
  %v1093 = vpop.f32.mrb[0].mxu0
  %v1094 = vadd.f32 %v1014, %v1093
  %v1095 = vpop.f32.mrb[0].mxu0
  %1096 = vdwg.mxu0
  %v1097 = vmul.f32 %v1089, %v1089
  %v1098 = vmul.f32 %v1094, %v1094
  %v1099 = vmul.f32 %v1089, %v1097
  %v1100 = vmul.f32 %v1094, %v1098
  %v1101 = vmul.f32 %v1099, 0.044715
  %v1102 = vmul.f32 %v1100, 0.044715
  %v1103 = vadd.f32 %v1089, %v1101
  %v1104 = vadd.f32 %v1094, %v1102
  %v1105 = vmul.f32 %v1103, 0.7978846
  %v1106 = vmul.f32 %v1104, 0.7978846
  %v1107 = vtanh.pop %v1105
  %v1108 = vtanh.pop %v1106
  %v1109 = vadd.f32 %v1107, 1.0
  %v1110 = vadd.f32 %v1108, 1.0
  %v1111 = vmul.f32 %v1109, 0.5
  %v1112 = vmul.f32 %v1110, 0.5
  %v1113 = vmul.f32 %v1089, %v1111
  %v1114 = vmul.f32 %v1094, %v1112
  %v1115 = vld [vmem:[%s11] sm:$0xff]
  %v1116 = vld [vmem:[%s11 + $0x8] sm:$0xff]
  %v1117 = vld [vmem:[%s11 + $0x10] sm:$0xff]
  %v1118 = vld [vmem:[%s11 + $0x18] sm:$0xff]
  %v1119 = vld [vmem:[%s11 + $0x20] sm:$0xff]
  %v1120 = vld [vmem:[%s11 + $0x28] sm:$0xff]
  %v1121 = vld [vmem:[%s11 + $0x30] sm:$0xff]
  %v1122 = vld [vmem:[%s11 + $0x38] sm:$0xff]
  %v1123 = vld [vmem:[%s11 + $0x40] sm:$0xff]
  %v1124 = vld [vmem:[%s11 + $0x48] sm:$0xff]
  %v1125 = vld [vmem:[%s11 + $0x50] sm:$0xff]
  %v1126 = vld [vmem:[%s11 + $0x58] sm:$0xff]
  %v1127 = vld [vmem:[%s11 + $0x60] sm:$0xff]
  %v1128 = vld [vmem:[%s11 + $0x68] sm:$0xff]
  %v1129 = vld [vmem:[%s11 + $0x70] sm:$0xff]
  %v1130 = vld [vmem:[%s11 + $0x78] sm:$0xff]
  %v1131 = vld [vmem:[%s12] sm:$0x1]
  %v1133 = vlaneseq
  %v1134 = vshrl.u32 %v1133, 7
  %v1135 = vsub.s32 0, %v1134
  %v1136 = vrot.slane %v1131, %v1135
  %1138 = vmatprep.subr.mxu0 0.0
  %1139 = vmatpush1.msra.mxu0 %v1115
  %1140 = vmatprep.subr.mxu0 0.0
  %1141 = vmatpush1.msra.mxu0 %v1116
  %1142 = vmatprep.subr.mxu0 0.0
  %1143 = vmatpush1.msra.mxu0 %v1117
  %1144 = vmatprep.subr.mxu0 0.0
  %1145 = vmatpush1.msra.mxu0 %v1118
  %1146 = vmatprep.subr.mxu0 0.0
  %1147 = vmatpush1.msra.mxu0 %v1119
  %1148 = vmatprep.subr.mxu0 0.0
  %1149 = vmatpush1.msra.mxu0 %v1120
  %1150 = vmatprep.subr.mxu0 0.0
  %1151 = vmatpush1.msra.mxu0 %v1121
  %1152 = vmatprep.subr.mxu0 0.0
  %1153 = vmatpush1.msra.mxu0 %v1122
  %1154 = vmatprep.subr.mxu0 0.0
  %1155 = vmatpush1.msra.mxu0 %v1123
  %1156 = vmatprep.subr.mxu0 0.0
  %1157 = vmatpush1.msra.mxu0 %v1124
  %1158 = vmatprep.subr.mxu0 0.0
  %1159 = vmatpush1.msra.mxu0 %v1125
  %1160 = vmatprep.subr.mxu0 0.0
  %1161 = vmatpush1.msra.mxu0 %v1126
  %1162 = vmatprep.subr.mxu0 0.0
  %1163 = vmatpush1.msra.mxu0 %v1127
  %1164 = vmatprep.subr.mxu0 0.0
  %1165 = vmatpush1.msra.mxu0 %v1128
  %1166 = vmatprep.subr.mxu0 0.0
  %1167 = vmatpush1.msra.mxu0 %v1129
  %1168 = vmatprep.subr.mxu0 0.0
  %1169 = vmatpush1.msra.mxu0 %v1130
  %1170 = vmatprep.subr.mxu0 0.0
  %1171 = vmatpush1.msra.mxu0 0.0
  %1172 = vmatprep.subr.mxu0 0.0
  %1173 = vmatpush1.msra.mxu0 0.0
  %1174 = vmatprep.subr.mxu0 0.0
  %1175 = vmatpush1.msra.mxu0 0.0
  %1176 = vmatprep.subr.mxu0 0.0
  %1177 = vmatpush1.msra.mxu0 0.0
  %1178 = vmatprep.subr.mxu0 0.0
  %1179 = vmatpush1.msra.mxu0 0.0
  %1180 = vmatprep.subr.mxu0 0.0
  %1181 = vmatpush1.msra.mxu0 0.0
  %1182 = vmatprep.subr.mxu0 0.0
  %1183 = vmatpush1.msra.mxu0 0.0
  %1184 = vmatprep.subr.mxu0 0.0
  %1185 = vmatpush1.msra.mxu0 0.0
  %1186 = vmatprep.subr.mxu0 0.0
  %1187 = vmatpush1.msra.mxu0 0.0
  %1188 = vmatprep.subr.mxu0 0.0
  %1189 = vmatpush1.msra.mxu0 0.0
  %1190 = vmatprep.subr.mxu0 0.0
  %1191 = vmatpush1.msra.mxu0 0.0
  %1192 = vmatprep.subr.mxu0 0.0
  %1193 = vmatpush1.msra.mxu0 0.0
  %1194 = vmatprep.subr.mxu0 0.0
  %1195 = vmatpush1.msra.mxu0 0.0
  %1196 = vmatprep.subr.mxu0 0.0
  %1197 = vmatpush1.msra.mxu0 0.0
  %1198 = vmatprep.subr.mxu0 0.0
  %1199 = vmatpush1.msra.mxu0 0.0
  %1200 = vmatprep.subr.mxu0 0.0
  %1201 = vmatpush1.msra.mxu0 0.0
  %1202 = vmatprep.mubr.f32.mxu0 0.0
  %1203 = vmatmul.mubr.f32.gmra.mrb[0].mxu0 %v1113
  %v1204 = vpop.f32.mrb[0].mxu0
  %v1205 = vadd.f32 %v1136, %v1204
  %v1206 = vpop.f32.mrb[0].mxu0
  %1207 = vmatprep.mubr.f32.mxu0 0.0
  %1208 = vmatmul.mubr.f32.gmra.mrb[0].mxu0 %v1114
  %v1209 = vpop.f32.mrb[0].mxu0
  %v1210 = vadd.f32 %v1136, %v1209
  %v1211 = vpop.f32.mrb[0].mxu0
  %1212 = vdwg.mxu0
  %v1213 = vadd.f32 %v959, %v1205
  %v1214 = vadd.f32 %v960, %v1210
  %1215 = vst.msk [vmem:[%s13] sm:$0xff] %vm48, %v1213
  %1216 = vst.msk [vmem:[%s13 + $0x8] sm:$0xff] %vm48, %v1214
  // Predicated region
  $region54: #{reformer_forward.2} parent=0 // pred_check
    _
  $region55: #{reformer_forward.2} parent=0 // pred_check_branch
    %1218 = sbr.rel (0) target = $region57
  $region56: #{reformer_forward.2} parent=0 // pred_region
    _
  $region57: #{reformer_forward.2} parent=0 // pred_fallthru
    _
  // Predicated region
  $region58: #{reformer_forward.2} parent=0 // pred_check
    _
  $region59: #{reformer_forward.2} parent=0 // pred_check_branch
    %1220 = sbr.rel (0) target = $region61
  $region60: #{reformer_forward.2} parent=0 // pred_region
    _
  $region61: #{reformer_forward.2} parent=0 // pred_fallthru
    _

</llo_original>
